<compile_context>
chip_gen: v7x
topology: tpu7x:2x2x1
jax: 0.10.0
libtpu: 0.0.40
codegen_flags: <defaults>
</compile_context>

<pallas_src>
import math
import functools

import jax
import jax.numpy as jnp
from jax.experimental import pallas as pl
from jax.experimental.pallas import tpu as pltpu


def _mha_kernel(q_ref, k_ref, v_ref,
                wq_ref, bq_ref, wk_ref, bk_ref, wv_ref, bv_ref,
                wo_ref, bo_ref, g_ref, beta_ref,
                o_ref,
                k_heads, v_heads,
                *, h, d_k, eps):
    f32 = jnp.float32
    bf16 = jnp.bfloat16

    # ---- K/V projection: once per batch, cached in persistent VMEM scratch ----
    @pl.when(pl.program_id(1) == 0)
    def _():
        k_in = k_ref[0]                                          # (S, D) bf16
        v_in = v_ref[0]                                          # (S, D) bf16
        K = jnp.dot(k_in, wk_ref[...], preferred_element_type=f32) + bk_ref[...]
        V = jnp.dot(v_in, wv_ref[...], preferred_element_type=f32) + bv_ref[...]
        for i in range(h):                                       # head-major cache layout
            sl = slice(i * d_k, (i + 1) * d_k)
            k_heads[i] = K[:, sl].astype(bf16)
            v_heads[i] = V[:, sl].astype(bf16)

    # ---- Q projection for this query tile (1/sqrt(d_k) folded into wq/bq) -----
    q_in = q_ref[0]                                              # (TQ, D) f32 (residual)
    Q = jnp.dot(q_in.astype(bf16), wq_ref[...], preferred_element_type=f32) + bq_ref[...]
    Qh = jnp.stack([Q[:, i * d_k:(i + 1) * d_k].astype(bf16) for i in range(h)],
                   axis=0)                                       # (h, TQ, d_k) bf16

    Kh = k_heads[...]                                            # (h, S, d_k) bf16
    Vh = v_heads[...]                                            # (h, S, d_k) bf16

    # ---- Scaled dot-product attention, all heads batched on the MXU -----------
    s = jnp.einsum('hqe,hke->hqk', Qh, Kh, preferred_element_type=f32)   # (h, TQ, S)
    m = jnp.max(s, axis=-1, keepdims=True)
    p = jnp.exp(s - m)
    l = jnp.sum(p, axis=-1, keepdims=True)
    ctx = jnp.einsum('hqk,hke->hqe', p.astype(bf16), Vh,
                     preferred_element_type=f32)                          # (h, TQ, d_k)
    ctx = ctx * pl.reciprocal(l, approx=True)        # normalize after p@V (same math), EUP

    # ---- Head concat -> single lane-dense output-projection matmul ------------
    ctx_cat = jnp.concatenate([ctx[i] for i in range(h)], axis=-1)        # (TQ, D) f32
    x = jnp.dot(ctx_cat.astype(bf16), wo_ref[...], preferred_element_type=f32)
    x = x + bo_ref[...] + q_in                                            # bias + residual

    # ---- LayerNorm over the feature dim ----------------------------------------
    mu = jnp.mean(x, axis=-1, keepdims=True)
    xc = x - mu
    var = jnp.mean(xc * xc, axis=-1, keepdims=True)
    y = xc * jax.lax.rsqrt(var + eps)
    o_ref[0] = (y * g_ref[...] + beta_ref[...]).astype(o_ref.dtype)


def multi_headed_attention(q, k, v, params, *, h):
    """q, k, v: (B, S, D) float32.  params: torch-layout weights (see __main__)."""
    B, S, D = q.shape
    assert D % h == 0
    d_k = D // h
    scale = 1.0 / math.sqrt(d_k)
    f32, bf16 = jnp.float32, jnp.bfloat16

    # Host-side weight prep: torch Linear weight is (out, in) -> ship as (in, out).
    wq = (params["wq"].T * scale).astype(bf16)        # scale folded into Q projection
    bq = (params["bq"] * scale).reshape(1, D).astype(f32)
    wk = params["wk"].T.astype(bf16)
    bk = params["bk"].reshape(1, D).astype(f32)
    wv = params["wv"].T.astype(bf16)
    bv = params["bv"].reshape(1, D).astype(f32)
    wo = params["wo"].T.astype(bf16)                  # input order = head-major concat
    bo = params["bo"].reshape(1, D).astype(f32)
    gamma = params["ln_g"].reshape(1, D).astype(f32)
    beta = params["ln_b"].reshape(1, D).astype(f32)

    # K/V are consumed in bf16 by the MXU; ship them in bf16 (halves their DMA).
    k_bf = k.astype(bf16)
    v_bf = v.astype(bf16)

    # --- Generation-aware VMEM budget / query-tile size -------------------------
    try:
        vmem_cap = int(pltpu.get_tpu_info().vmem_capacity_bytes)
    except Exception:
        vmem_cap = None
    vmem_limit = None if vmem_cap is None else (vmem_cap * 3) // 4   # keep headroom
    small_vmem = vmem_cap is not None and vmem_cap <= 80 * 1024 * 1024   # v7x class
    tq_cap = 128 if small_vmem else 256

    # Query tiling: pad QUERIES (not keys) when S doesn't tile evenly so the
    # softmax over keys stays exact; padded rows are sliced off afterwards.
    if S <= tq_cap:
        TQ, S_q = S, S
    else:
        TQ = tq_cap
        S_q = pl.cdiv(S, TQ) * TQ
    n_qt = S_q // TQ
    q_pad = q if S_q == S else jnp.pad(q, ((0, 0), (0, S_q - S), (0, 0)))

    kernel = functools.partial(_mha_kernel, h=h, d_k=d_k, eps=1e-5)

    q_spec = pl.BlockSpec((1, TQ, D), lambda b, i: (b, i, 0))
    kv_spec = pl.BlockSpec((1, S, D), lambda b, i: (b, 0, 0))
    mat_spec = pl.BlockSpec((D, D), lambda b, i: (0, 0))
    row_spec = pl.BlockSpec((1, D), lambda b, i: (0, 0))

    cost = pl.CostEstimate(
        flops=int(8 * B * S * D * D + 4 * B * S * S * D),
        transcendentals=int(B * h * S_q * S),
        bytes_accessed=int(B * S * D * (4 + 2 + 2 + 4) + 4 * D * D * 2 + 8 * D * 4),
    )

    cp_kwargs = dict(dimension_semantics=("parallel", "arbitrary"))
    if vmem_limit is not None:
        cp_kwargs["vmem_limit_bytes"] = int(vmem_limit)

    out = pl.pallas_call(
        kernel,
        out_shape=jax.ShapeDtypeStruct((B, S_q, D), q.dtype),
        grid_spec=pltpu.PrefetchScalarGridSpec(
            num_scalar_prefetch=0,
            grid=(B, n_qt),
            in_specs=[
                q_spec, kv_spec, kv_spec,       # q, k, v
                mat_spec, row_spec,             # wq, bq (scaled)
                mat_spec, row_spec,             # wk, bk
                mat_spec, row_spec,             # wv, bv
                mat_spec, row_spec,             # wo, bo
                row_spec, row_spec,             # ln gamma, ln beta
            ],
            out_specs=q_spec,
            scratch_shapes=[
                pltpu.VMEM((h, S, d_k), bf16),  # cached K, head-major
                pltpu.VMEM((h, S, d_k), bf16),  # cached V, head-major
            ],
        ),
        compiler_params=pltpu.CompilerParams(**cp_kwargs),
        cost_estimate=cost,
    )(q_pad, k_bf, v_bf, wq, bq, wk, bk, wv, bv, wo, bo, gamma, beta)

    return out if S_q == S else out[:, :S]


def _reference(q, k, v, params, *, h):
    """Pure-JAX f32 reference mirroring the PyTorch module (mask=None)."""
    B, S, D = q.shape
    d_k = D // h

    def lin(x, w, b):
        return x @ w.T + b

    Q = lin(q, params["wq"], params["bq"]).reshape(B, S, h, d_k).transpose(0, 2, 1, 3)
    K = lin(k, params["wk"], params["bk"]).reshape(B, S, h, d_k).transpose(0, 2, 1, 3)
    V = lin(v, params["wv"], params["bv"]).reshape(B, S, h, d_k).transpose(0, 2, 1, 3)

    scores = jnp.einsum("bhqd,bhkd->bhqk", Q, K) / math.sqrt(d_k)
    p = jax.nn.softmax(scores, axis=-1)
    x = jnp.einsum("bhqk,bhkd->bhqd", p, V)
    x = x.transpose(0, 2, 1, 3).reshape(B, S, D)
    x = lin(x, params["wo"], params["bo"]) + q

    mu = jnp.mean(x, axis=-1, keepdims=True)
    var = jnp.mean((x - mu) ** 2, axis=-1, keepdims=True)
    return (x - mu) / jnp.sqrt(var + 1e-5) * params["ln_g"] + params["ln_b"]


if __name__ == "__main__":
    B, S, d_model, h = 2, 8, 32, 4

    key = jax.random.PRNGKey(0)
    keys = jax.random.split(key, 12)

    # torch.nn.Linear weight shape is (out_features, in_features).
    std = 1.0 / math.sqrt(d_model)
    params = {
        "wq": jax.random.uniform(keys[0], (d_model, d_model), jnp.float32, -std, std),
        "bq": jax.random.uniform(keys[1], (d_model,), jnp.float32, -std, std),
        "wk": jax.random.uniform(keys[2], (d_model, d_model), jnp.float32, -std, std),
        "bk": jax.random.uniform(keys[3], (d_model,), jnp.float32, -std, std),
        "wv": jax.random.uniform(keys[4], (d_model, d_model), jnp.float32, -std, std),
        "bv": jax.random.uniform(keys[5], (d_model,), jnp.float32, -std, std),
        "wo": jax.random.uniform(keys[6], (d_model, d_model), jnp.float32, -std, std),
        "bo": jax.random.uniform(keys[7], (d_model,), jnp.float32, -std, std),
        "ln_g": jnp.ones((d_model,), jnp.float32),
        "ln_b": jnp.zeros((d_model,), jnp.float32),
    }

    q = jax.random.normal(keys[8], (B, S, d_model), jnp.float32)
    k = jax.random.normal(keys[9], (B, S, d_model), jnp.float32)
    v = jax.random.normal(keys[10], (B, S, d_model), jnp.float32)

    out = multi_headed_attention(q, k, v, params, h=h)
    out = jax.block_until_ready(out)

    ref = _reference(q, k, v, params, h=h)
    assert out.shape == (B, S, d_model)
    # bf16 inputs/MXU matmuls + approx reciprocal -> loosened tolerance vs f32 reference.
    assert jnp.allclose(out, ref, atol=5e-2, rtol=5e-2), "mismatch vs reference"

    print("KERNEL_OK")
</pallas_src>

<mosaic_0001>
module attributes {stable_mosaic.version = 11 : i64} {
  func.func @_mha_kernel(%arg0: i32, %arg1: i32, %arg2: memref<1x8x32xf32, #tpu.memory_space<vmem>>, %arg3: memref<1x8x32xbf16, #tpu.memory_space<vmem>>, %arg4: memref<1x8x32xbf16, #tpu.memory_space<vmem>>, %arg5: memref<32x32xbf16, #tpu.memory_space<vmem>>, %arg6: memref<1x32xf32, #tpu.memory_space<vmem>>, %arg7: memref<32x32xbf16, #tpu.memory_space<vmem>>, %arg8: memref<1x32xf32, #tpu.memory_space<vmem>>, %arg9: memref<32x32xbf16, #tpu.memory_space<vmem>>, %arg10: memref<1x32xf32, #tpu.memory_space<vmem>>, %arg11: memref<32x32xbf16, #tpu.memory_space<vmem>>, %arg12: memref<1x32xf32, #tpu.memory_space<vmem>>, %arg13: memref<1x32xf32, #tpu.memory_space<vmem>>, %arg14: memref<1x32xf32, #tpu.memory_space<vmem>>, %arg15: memref<1x8x32xf32, #tpu.memory_space<vmem>>, %arg16: memref<4x8x8xbf16, #tpu.memory_space<vmem>>, %arg17: memref<4x8x8xbf16, #tpu.memory_space<vmem>>) attributes {dimension_semantics = [#tpu.dimension_semantics<parallel>, #tpu.dimension_semantics<arbitrary>], iteration_bounds = array<i64: 2, 1>, scalar_prefetch = 0 : i64, scratch_operands = 2 : i64, tpu.core_type = #tpu.core_type<tc>, window_params = [{transform_indices = @transform_0, window_bounds = array<i64: 1, 8, 32>}, {transform_indices = @transform_1, window_bounds = array<i64: 1, 8, 32>}, {transform_indices = @transform_2, window_bounds = array<i64: 1, 8, 32>}, {pipeline_mode = #tpu.pipeline_mode<synchronous>, transform_indices = @transform_3, window_bounds = array<i64: 32, 32>}, {pipeline_mode = #tpu.pipeline_mode<synchronous>, transform_indices = @transform_4, window_bounds = array<i64: 1, 32>}, {pipeline_mode = #tpu.pipeline_mode<synchronous>, transform_indices = @transform_5, window_bounds = array<i64: 32, 32>}, {pipeline_mode = #tpu.pipeline_mode<synchronous>, transform_indices = @transform_6, window_bounds = array<i64: 1, 32>}, {pipeline_mode = #tpu.pipeline_mode<synchronous>, transform_indices = @transform_7, window_bounds = array<i64: 32, 32>}, {pipeline_mode = #tpu.pipeline_mode<synchronous>, transform_indices = @transform_8, window_bounds = array<i64: 1, 32>}, {pipeline_mode = #tpu.pipeline_mode<synchronous>, transform_indices = @transform_9, window_bounds = array<i64: 32, 32>}, {pipeline_mode = #tpu.pipeline_mode<synchronous>, transform_indices = @transform_10, window_bounds = array<i64: 1, 32>}, {pipeline_mode = #tpu.pipeline_mode<synchronous>, transform_indices = @transform_11, window_bounds = array<i64: 1, 32>}, {pipeline_mode = #tpu.pipeline_mode<synchronous>, transform_indices = @transform_12, window_bounds = array<i64: 1, 32>}, {transform_indices = @transform_13, window_bounds = array<i64: 1, 8, 32>}]} {
    %c0_i32 = arith.constant 0 : i32
    %0 = arith.cmpi eq, %arg1, %c0_i32 : i32
    %1 = arith.extui %0 : i1 to i32
    %c0_i32_0 = arith.constant 0 : i32
    %2 = arith.cmpi ne, %1, %c0_i32_0 : i32
    scf.if %2 {
      %c0_34 = arith.constant 0 : index
      %c0_35 = arith.constant 0 : index
      %c0_36 = arith.constant 0 : index
      %80 = vector.load %arg3[%c0_34, %c0_35, %c0_36] : memref<1x8x32xbf16, #tpu.memory_space<vmem>>, vector<1x8x32xbf16>
      %81 = vector.shape_cast %80 : vector<1x8x32xbf16> to vector<8x32xbf16>
      %c0_37 = arith.constant 0 : index
      %c0_38 = arith.constant 0 : index
      %c0_39 = arith.constant 0 : index
      %82 = vector.load %arg4[%c0_37, %c0_38, %c0_39] : memref<1x8x32xbf16, #tpu.memory_space<vmem>>, vector<1x8x32xbf16>
      %83 = vector.shape_cast %82 : vector<1x8x32xbf16> to vector<8x32xbf16>
      %c0_40 = arith.constant 0 : index
      %c0_41 = arith.constant 0 : index
      %84 = vector.load %arg7[%c0_40, %c0_41] : memref<32x32xbf16, #tpu.memory_space<vmem>>, vector<32x32xbf16>
      %cst_42 = arith.constant dense<0.000000e+00> : vector<8x32xf32>
      %85 = tpu.matmul %81, %84, %cst_42 {dimension_numbers = #tpu.dot_dimension_numbers<[1], [0], [0], [1], [0, 0, 1, 1], [], []>} : vector<8x32xbf16>, vector<32x32xbf16>, vector<8x32xf32> -> vector<8x32xf32>
      %c0_43 = arith.constant 0 : index
      %c0_44 = arith.constant 0 : index
      %86 = vector.load %arg8[%c0_43, %c0_44] : memref<1x32xf32, #tpu.memory_space<vmem>>, vector<1x32xf32>
      %87 = vector.broadcast %86 : vector<1x32xf32> to vector<8x32xf32>
      %88 = arith.addf %85, %87 : vector<8x32xf32>
      %c0_45 = arith.constant 0 : index
      %c0_46 = arith.constant 0 : index
      %89 = vector.load %arg9[%c0_45, %c0_46] : memref<32x32xbf16, #tpu.memory_space<vmem>>, vector<32x32xbf16>
      %cst_47 = arith.constant dense<0.000000e+00> : vector<8x32xf32>
      %90 = tpu.matmul %83, %89, %cst_47 {dimension_numbers = #tpu.dot_dimension_numbers<[1], [0], [0], [1], [0, 0, 1, 1], [], []>} : vector<8x32xbf16>, vector<32x32xbf16>, vector<8x32xf32> -> vector<8x32xf32>
      %c0_48 = arith.constant 0 : index
      %c0_49 = arith.constant 0 : index
      %91 = vector.load %arg10[%c0_48, %c0_49] : memref<1x32xf32, #tpu.memory_space<vmem>>, vector<1x32xf32>
      %92 = vector.broadcast %91 : vector<1x32xf32> to vector<8x32xf32>
      %93 = arith.addf %90, %92 : vector<8x32xf32>
      %94 = vector.extract_strided_slice %88 {offsets = [0, 0], sizes = [8, 8], strides = [1, 1]} : vector<8x32xf32> to vector<8x8xf32>
      %95 = arith.truncf %94 : vector<8x8xf32> to vector<8x8xbf16>
      %c0_50 = arith.constant 0 : index
      %c0_51 = arith.constant 0 : index
      %c0_52 = arith.constant 0 : index
      %96 = vector.load %arg16[%c0_50, %c0_51, %c0_52] : memref<4x8x8xbf16, #tpu.memory_space<vmem>>, vector<1x8x8xbf16>
      %97 = vector.shape_cast %96 : vector<1x8x8xbf16> to vector<8x8xbf16>
      %98 = vector.shape_cast %95 : vector<8x8xbf16> to vector<1x8x8xbf16>
      tpu.vector_store %arg16[%c0_50, %c0_51, %c0_52], %98 {strides = array<i32>} : memref<4x8x8xbf16, #tpu.memory_space<vmem>>, vector<1x8x8xbf16>,
      %99 = vector.extract_strided_slice %93 {offsets = [0, 0], sizes = [8, 8], strides = [1, 1]} : vector<8x32xf32> to vector<8x8xf32>
      %100 = arith.truncf %99 : vector<8x8xf32> to vector<8x8xbf16>
      %c0_53 = arith.constant 0 : index
      %c0_54 = arith.constant 0 : index
      %c0_55 = arith.constant 0 : index
      %101 = vector.load %arg17[%c0_53, %c0_54, %c0_55] : memref<4x8x8xbf16, #tpu.memory_space<vmem>>, vector<1x8x8xbf16>
      %102 = vector.shape_cast %101 : vector<1x8x8xbf16> to vector<8x8xbf16>
      %103 = vector.shape_cast %100 : vector<8x8xbf16> to vector<1x8x8xbf16>
      tpu.vector_store %arg17[%c0_53, %c0_54, %c0_55], %103 {strides = array<i32>} : memref<4x8x8xbf16, #tpu.memory_space<vmem>>, vector<1x8x8xbf16>,
      %104 = vector.extract_strided_slice %88 {offsets = [0, 8], sizes = [8, 8], strides = [1, 1]} : vector<8x32xf32> to vector<8x8xf32>
      %105 = arith.truncf %104 : vector<8x8xf32> to vector<8x8xbf16>
      %c1 = arith.constant 1 : index
      %c0_56 = arith.constant 0 : index
      %c0_57 = arith.constant 0 : index
      %106 = vector.load %arg16[%c1, %c0_56, %c0_57] : memref<4x8x8xbf16, #tpu.memory_space<vmem>>, vector<1x8x8xbf16>
      %107 = vector.shape_cast %106 : vector<1x8x8xbf16> to vector<8x8xbf16>
      %108 = vector.shape_cast %105 : vector<8x8xbf16> to vector<1x8x8xbf16>
      tpu.vector_store %arg16[%c1, %c0_56, %c0_57], %108 {strides = array<i32>} : memref<4x8x8xbf16, #tpu.memory_space<vmem>>, vector<1x8x8xbf16>,
      %109 = vector.extract_strided_slice %93 {offsets = [0, 8], sizes = [8, 8], strides = [1, 1]} : vector<8x32xf32> to vector<8x8xf32>
      %110 = arith.truncf %109 : vector<8x8xf32> to vector<8x8xbf16>
      %c1_58 = arith.constant 1 : index
      %c0_59 = arith.constant 0 : index
      %c0_60 = arith.constant 0 : index
      %111 = vector.load %arg17[%c1_58, %c0_59, %c0_60] : memref<4x8x8xbf16, #tpu.memory_space<vmem>>, vector<1x8x8xbf16>
      %112 = vector.shape_cast %111 : vector<1x8x8xbf16> to vector<8x8xbf16>
      %113 = vector.shape_cast %110 : vector<8x8xbf16> to vector<1x8x8xbf16>
      tpu.vector_store %arg17[%c1_58, %c0_59, %c0_60], %113 {strides = array<i32>} : memref<4x8x8xbf16, #tpu.memory_space<vmem>>, vector<1x8x8xbf16>,
      %114 = vector.extract_strided_slice %88 {offsets = [0, 16], sizes = [8, 8], strides = [1, 1]} : vector<8x32xf32> to vector<8x8xf32>
      %115 = arith.truncf %114 : vector<8x8xf32> to vector<8x8xbf16>
      %c2 = arith.constant 2 : index
      %c0_61 = arith.constant 0 : index
      %c0_62 = arith.constant 0 : index
      %116 = vector.load %arg16[%c2, %c0_61, %c0_62] : memref<4x8x8xbf16, #tpu.memory_space<vmem>>, vector<1x8x8xbf16>
      %117 = vector.shape_cast %116 : vector<1x8x8xbf16> to vector<8x8xbf16>
      %118 = vector.shape_cast %115 : vector<8x8xbf16> to vector<1x8x8xbf16>
      tpu.vector_store %arg16[%c2, %c0_61, %c0_62], %118 {strides = array<i32>} : memref<4x8x8xbf16, #tpu.memory_space<vmem>>, vector<1x8x8xbf16>,
      %119 = vector.extract_strided_slice %93 {offsets = [0, 16], sizes = [8, 8], strides = [1, 1]} : vector<8x32xf32> to vector<8x8xf32>
      %120 = arith.truncf %119 : vector<8x8xf32> to vector<8x8xbf16>
      %c2_63 = arith.constant 2 : index
      %c0_64 = arith.constant 0 : index
      %c0_65 = arith.constant 0 : index
      %121 = vector.load %arg17[%c2_63, %c0_64, %c0_65] : memref<4x8x8xbf16, #tpu.memory_space<vmem>>, vector<1x8x8xbf16>
      %122 = vector.shape_cast %121 : vector<1x8x8xbf16> to vector<8x8xbf16>
      %123 = vector.shape_cast %120 : vector<8x8xbf16> to vector<1x8x8xbf16>
      tpu.vector_store %arg17[%c2_63, %c0_64, %c0_65], %123 {strides = array<i32>} : memref<4x8x8xbf16, #tpu.memory_space<vmem>>, vector<1x8x8xbf16>,
      %124 = vector.extract_strided_slice %88 {offsets = [0, 24], sizes = [8, 8], strides = [1, 1]} : vector<8x32xf32> to vector<8x8xf32>
      %125 = arith.truncf %124 : vector<8x8xf32> to vector<8x8xbf16>
      %c3 = arith.constant 3 : index
      %c0_66 = arith.constant 0 : index
      %c0_67 = arith.constant 0 : index
      %126 = vector.load %arg16[%c3, %c0_66, %c0_67] : memref<4x8x8xbf16, #tpu.memory_space<vmem>>, vector<1x8x8xbf16>
      %127 = vector.shape_cast %126 : vector<1x8x8xbf16> to vector<8x8xbf16>
      %128 = vector.shape_cast %125 : vector<8x8xbf16> to vector<1x8x8xbf16>
      tpu.vector_store %arg16[%c3, %c0_66, %c0_67], %128 {strides = array<i32>} : memref<4x8x8xbf16, #tpu.memory_space<vmem>>, vector<1x8x8xbf16>,
      %129 = vector.extract_strided_slice %93 {offsets = [0, 24], sizes = [8, 8], strides = [1, 1]} : vector<8x32xf32> to vector<8x8xf32>
      %130 = arith.truncf %129 : vector<8x8xf32> to vector<8x8xbf16>
      %c3_68 = arith.constant 3 : index
      %c0_69 = arith.constant 0 : index
      %c0_70 = arith.constant 0 : index
      %131 = vector.load %arg17[%c3_68, %c0_69, %c0_70] : memref<4x8x8xbf16, #tpu.memory_space<vmem>>, vector<1x8x8xbf16>
      %132 = vector.shape_cast %131 : vector<1x8x8xbf16> to vector<8x8xbf16>
      %133 = vector.shape_cast %130 : vector<8x8xbf16> to vector<1x8x8xbf16>
      tpu.vector_store %arg17[%c3_68, %c0_69, %c0_70], %133 {strides = array<i32>} : memref<4x8x8xbf16, #tpu.memory_space<vmem>>, vector<1x8x8xbf16>,
    } else {
    }
    %c0 = arith.constant 0 : index
    %c0_1 = arith.constant 0 : index
    %c0_2 = arith.constant 0 : index
    %3 = vector.load %arg2[%c0, %c0_1, %c0_2] : memref<1x8x32xf32, #tpu.memory_space<vmem>>, vector<1x8x32xf32>
    %4 = vector.shape_cast %3 : vector<1x8x32xf32> to vector<8x32xf32>
    %5 = arith.truncf %4 : vector<8x32xf32> to vector<8x32xbf16>
    %c0_3 = arith.constant 0 : index
    %c0_4 = arith.constant 0 : index
    %6 = vector.load %arg5[%c0_3, %c0_4] : memref<32x32xbf16, #tpu.memory_space<vmem>>, vector<32x32xbf16>
    %cst = arith.constant dense<0.000000e+00> : vector<8x32xf32>
    %7 = tpu.matmul %5, %6, %cst {dimension_numbers = #tpu.dot_dimension_numbers<[1], [0], [0], [1], [0, 0, 1, 1], [], []>} : vector<8x32xbf16>, vector<32x32xbf16>, vector<8x32xf32> -> vector<8x32xf32>
    %c0_5 = arith.constant 0 : index
    %c0_6 = arith.constant 0 : index
    %8 = vector.load %arg6[%c0_5, %c0_6] : memref<1x32xf32, #tpu.memory_space<vmem>>, vector<1x32xf32>
    %9 = vector.broadcast %8 : vector<1x32xf32> to vector<8x32xf32>
    %10 = arith.addf %7, %9 : vector<8x32xf32>
    %11 = vector.extract_strided_slice %10 {offsets = [0, 0], sizes = [8, 8], strides = [1, 1]} : vector<8x32xf32> to vector<8x8xf32>
    %12 = arith.truncf %11 : vector<8x8xf32> to vector<8x8xbf16>
    %13 = vector.extract_strided_slice %10 {offsets = [0, 8], sizes = [8, 8], strides = [1, 1]} : vector<8x32xf32> to vector<8x8xf32>
    %14 = arith.truncf %13 : vector<8x8xf32> to vector<8x8xbf16>
    %15 = vector.extract_strided_slice %10 {offsets = [0, 16], sizes = [8, 8], strides = [1, 1]} : vector<8x32xf32> to vector<8x8xf32>
    %16 = arith.truncf %15 : vector<8x8xf32> to vector<8x8xbf16>
    %17 = vector.extract_strided_slice %10 {offsets = [0, 24], sizes = [8, 8], strides = [1, 1]} : vector<8x32xf32> to vector<8x8xf32>
    %18 = arith.truncf %17 : vector<8x8xf32> to vector<8x8xbf16>
    %19 = vector.shape_cast %12 : vector<8x8xbf16> to vector<1x8x8xbf16>
    %20 = vector.shape_cast %14 : vector<8x8xbf16> to vector<1x8x8xbf16>
    %21 = vector.shape_cast %16 : vector<8x8xbf16> to vector<1x8x8xbf16>
    %22 = vector.shape_cast %18 : vector<8x8xbf16> to vector<1x8x8xbf16>
    %23 = tpu.concatenate %19, %20, %21, %22 in 0 : vector<1x8x8xbf16>, vector<1x8x8xbf16>, vector<1x8x8xbf16>, vector<1x8x8xbf16> -> vector<4x8x8xbf16>
    %c0_7 = arith.constant 0 : index
    %c0_8 = arith.constant 0 : index
    %c0_9 = arith.constant 0 : index
    %24 = vector.load %arg16[%c0_7, %c0_8, %c0_9] : memref<4x8x8xbf16, #tpu.memory_space<vmem>>, vector<4x8x8xbf16>
    %c0_10 = arith.constant 0 : index
    %c0_11 = arith.constant 0 : index
    %c0_12 = arith.constant 0 : index
    %25 = vector.load %arg17[%c0_10, %c0_11, %c0_12] : memref<4x8x8xbf16, #tpu.memory_space<vmem>>, vector<4x8x8xbf16>
    "tpu.trace_start"() <{level = 10 : i32, message = "hqe,hke->hqk"}> : () -> ()
    %cst_13 = arith.constant dense<0.000000e+00> : vector<4x8x8xf32>
    %26 = tpu.matmul %23, %24, %cst_13 {dimension_numbers = #tpu.dot_dimension_numbers<[2], [2], [1], [1], [0, 0, 0, 1, 1, 1], [0], [0]>} : vector<4x8x8xbf16>, vector<4x8x8xbf16>, vector<4x8x8xf32> -> vector<4x8x8xf32>
    "tpu.trace_stop"() : () -> ()
    %cst_14 = arith.constant dense<0xFF800000> : vector<4x8xf32>
    %27 = vector.multi_reduction <maximumf>, %26, %cst_14 [2] : vector<4x8x8xf32> to vector<4x8xf32>
    %28 = vector.shape_cast %27 : vector<4x8xf32> to vector<4x8x1xf32>
    %29 = vector.broadcast %28 : vector<4x8x1xf32> to vector<4x8x8xf32>
    %30 = arith.subf %26, %29 : vector<4x8x8xf32>
    %31 = math.exp %30 : vector<4x8x8xf32>
    %cst_15 = arith.constant dense<0.000000e+00> : vector<4x8xf32>
    %32 = vector.multi_reduction <add>, %31, %cst_15 [2] : vector<4x8x8xf32> to vector<4x8xf32>
    %33 = vector.shape_cast %32 : vector<4x8xf32> to vector<4x8x1xf32>
    %34 = arith.truncf %31 : vector<4x8x8xf32> to vector<4x8x8xbf16>
    "tpu.trace_start"() <{level = 10 : i32, message = "hqk,hke->hqe"}> : () -> ()
    %cst_16 = arith.constant dense<0.000000e+00> : vector<4x8x8xf32>
    %35 = tpu.matmul %34, %25, %cst_16 {dimension_numbers = #tpu.dot_dimension_numbers<[2], [1], [1], [2], [0, 0, 0, 1, 1, 2], [0], [0]>} : vector<4x8x8xbf16>, vector<4x8x8xbf16>, vector<4x8x8xf32> -> vector<4x8x8xf32>
    "tpu.trace_stop"() : () -> ()
    %36 = tpu.reciprocal %33 {approx = true} : vector<4x8x1xf32> -> vector<4x8x1xf32>
    %37 = vector.broadcast %36 : vector<4x8x1xf32> to vector<4x8x8xf32>
    %38 = arith.mulf %35, %37 : vector<4x8x8xf32>
    %39 = vector.extract_strided_slice %38 {offsets = [0, 0, 0], sizes = [1, 8, 8], strides = [1, 1, 1]} : vector<4x8x8xf32> to vector<1x8x8xf32>
    %40 = vector.shape_cast %39 : vector<1x8x8xf32> to vector<8x8xf32>
    %41 = vector.extract_strided_slice %38 {offsets = [1, 0, 0], sizes = [1, 8, 8], strides = [1, 1, 1]} : vector<4x8x8xf32> to vector<1x8x8xf32>
    %42 = vector.shape_cast %41 : vector<1x8x8xf32> to vector<8x8xf32>
    %43 = vector.extract_strided_slice %38 {offsets = [2, 0, 0], sizes = [1, 8, 8], strides = [1, 1, 1]} : vector<4x8x8xf32> to vector<1x8x8xf32>
    %44 = vector.shape_cast %43 : vector<1x8x8xf32> to vector<8x8xf32>
    %45 = vector.extract_strided_slice %38 {offsets = [3, 0, 0], sizes = [1, 8, 8], strides = [1, 1, 1]} : vector<4x8x8xf32> to vector<1x8x8xf32>
    %46 = vector.shape_cast %45 : vector<1x8x8xf32> to vector<8x8xf32>
    %47 = tpu.concatenate %40, %42, %44, %46 in 1 : vector<8x8xf32>, vector<8x8xf32>, vector<8x8xf32>, vector<8x8xf32> -> vector<8x32xf32>
    %48 = arith.truncf %47 : vector<8x32xf32> to vector<8x32xbf16>
    %c0_17 = arith.constant 0 : index
    %c0_18 = arith.constant 0 : index
    %49 = vector.load %arg11[%c0_17, %c0_18] : memref<32x32xbf16, #tpu.memory_space<vmem>>, vector<32x32xbf16>
    %cst_19 = arith.constant dense<0.000000e+00> : vector<8x32xf32>
    %50 = tpu.matmul %48, %49, %cst_19 {dimension_numbers = #tpu.dot_dimension_numbers<[1], [0], [0], [1], [0, 0, 1, 1], [], []>} : vector<8x32xbf16>, vector<32x32xbf16>, vector<8x32xf32> -> vector<8x32xf32>
    %c0_20 = arith.constant 0 : index
    %c0_21 = arith.constant 0 : index
    %51 = vector.load %arg12[%c0_20, %c0_21] : memref<1x32xf32, #tpu.memory_space<vmem>>, vector<1x32xf32>
    %52 = vector.broadcast %51 : vector<1x32xf32> to vector<8x32xf32>
    %53 = arith.addf %50, %52 : vector<8x32xf32>
    %54 = arith.addf %53, %4 : vector<8x32xf32>
    %cst_22 = arith.constant dense<0.000000e+00> : vector<8xf32>
    %55 = vector.multi_reduction <add>, %54, %cst_22 [1] : vector<8x32xf32> to vector<8xf32>
    %56 = vector.shape_cast %55 : vector<8xf32> to vector<8x1xf32>
    %cst_23 = arith.constant 3.200000e+01 : f32
    %57 = vector.broadcast %cst_23 : f32 to vector<8x1xf32>
    %58 = arith.divf %56, %57 : vector<8x1xf32>
    %59 = vector.broadcast %58 : vector<8x1xf32> to vector<8x32xf32>
    %60 = arith.subf %54, %59 : vector<8x32xf32>
    %61 = arith.mulf %60, %60 : vector<8x32xf32>
    %cst_24 = arith.constant dense<0.000000e+00> : vector<8xf32>
    %62 = vector.multi_reduction <add>, %61, %cst_24 [1] : vector<8x32xf32> to vector<8xf32>
    %63 = vector.shape_cast %62 : vector<8xf32> to vector<8x1xf32>
    %cst_25 = arith.constant 3.200000e+01 : f32
    %64 = vector.broadcast %cst_25 : f32 to vector<8x1xf32>
    %65 = arith.divf %63, %64 : vector<8x1xf32>
    %cst_26 = arith.constant 9.99999974E-6 : f32
    %66 = vector.broadcast %cst_26 : f32 to vector<8x1xf32>
    %67 = arith.addf %65, %66 : vector<8x1xf32>
    %68 = math.rsqrt %67 : vector<8x1xf32>
    %69 = vector.broadcast %68 : vector<8x1xf32> to vector<8x32xf32>
    %70 = arith.mulf %60, %69 : vector<8x32xf32>
    %c0_27 = arith.constant 0 : index
    %c0_28 = arith.constant 0 : index
    %71 = vector.load %arg13[%c0_27, %c0_28] : memref<1x32xf32, #tpu.memory_space<vmem>>, vector<1x32xf32>
    %72 = vector.broadcast %71 : vector<1x32xf32> to vector<8x32xf32>
    %73 = arith.mulf %70, %72 : vector<8x32xf32>
    %c0_29 = arith.constant 0 : index
    %c0_30 = arith.constant 0 : index
    %74 = vector.load %arg14[%c0_29, %c0_30] : memref<1x32xf32, #tpu.memory_space<vmem>>, vector<1x32xf32>
    %75 = vector.broadcast %74 : vector<1x32xf32> to vector<8x32xf32>
    %76 = arith.addf %73, %75 : vector<8x32xf32>
    %c0_31 = arith.constant 0 : index
    %c0_32 = arith.constant 0 : index
    %c0_33 = arith.constant 0 : index
    %77 = vector.load %arg15[%c0_31, %c0_32, %c0_33] : memref<1x8x32xf32, #tpu.memory_space<vmem>>, vector<1x8x32xf32>
    %78 = vector.shape_cast %77 : vector<1x8x32xf32> to vector<8x32xf32>
    %79 = vector.shape_cast %76 : vector<8x32xf32> to vector<1x8x32xf32>
    tpu.vector_store %arg15[%c0_31, %c0_32, %c0_33], %79 {strides = array<i32>} : memref<1x8x32xf32, #tpu.memory_space<vmem>>, vector<1x8x32xf32>,
    return
  }
  func.func @transform_0(%arg0: i32, %arg1: i32) -> (i32, i32, i32) {
    %c0_i32 = arith.constant 0 : i32
    %c0_i32_0 = arith.constant 0 : i32
    return %arg0, %arg1, %c0_i32 : i32, i32, i32
  }
  func.func @transform_1(%arg0: i32, %arg1: i32) -> (i32, i32, i32) {
    %c0_i32 = arith.constant 0 : i32
    %c0_i32_0 = arith.constant 0 : i32
    %c0_i32_1 = arith.constant 0 : i32
    return %arg0, %c0_i32, %c0_i32_0 : i32, i32, i32
  }
  func.func @transform_2(%arg0: i32, %arg1: i32) -> (i32, i32, i32) {
    %c0_i32 = arith.constant 0 : i32
    %c0_i32_0 = arith.constant 0 : i32
    %c0_i32_1 = arith.constant 0 : i32
    return %arg0, %c0_i32, %c0_i32_0 : i32, i32, i32
  }
  func.func @transform_3(%arg0: i32, %arg1: i32) -> (i32, i32) {
    %c0_i32 = arith.constant 0 : i32
    %c0_i32_0 = arith.constant 0 : i32
    %c0_i32_1 = arith.constant 0 : i32
    return %c0_i32, %c0_i32_0 : i32, i32
  }
  func.func @transform_4(%arg0: i32, %arg1: i32) -> (i32, i32) {
    %c0_i32 = arith.constant 0 : i32
    %c0_i32_0 = arith.constant 0 : i32
    %c0_i32_1 = arith.constant 0 : i32
    return %c0_i32, %c0_i32_0 : i32, i32
  }
  func.func @transform_5(%arg0: i32, %arg1: i32) -> (i32, i32) {
    %c0_i32 = arith.constant 0 : i32
    %c0_i32_0 = arith.constant 0 : i32
    %c0_i32_1 = arith.constant 0 : i32
    return %c0_i32, %c0_i32_0 : i32, i32
  }
  func.func @transform_6(%arg0: i32, %arg1: i32) -> (i32, i32) {
    %c0_i32 = arith.constant 0 : i32
    %c0_i32_0 = arith.constant 0 : i32
    %c0_i32_1 = arith.constant 0 : i32
    return %c0_i32, %c0_i32_0 : i32, i32
  }
  func.func @transform_7(%arg0: i32, %arg1: i32) -> (i32, i32) {
    %c0_i32 = arith.constant 0 : i32
    %c0_i32_0 = arith.constant 0 : i32
    %c0_i32_1 = arith.constant 0 : i32
    return %c0_i32, %c0_i32_0 : i32, i32
  }
  func.func @transform_8(%arg0: i32, %arg1: i32) -> (i32, i32) {
    %c0_i32 = arith.constant 0 : i32
    %c0_i32_0 = arith.constant 0 : i32
    %c0_i32_1 = arith.constant 0 : i32
    return %c0_i32, %c0_i32_0 : i32, i32
  }
  func.func @transform_9(%arg0: i32, %arg1: i32) -> (i32, i32) {
    %c0_i32 = arith.constant 0 : i32
    %c0_i32_0 = arith.constant 0 : i32
    %c0_i32_1 = arith.constant 0 : i32
    return %c0_i32, %c0_i32_0 : i32, i32
  }
  func.func @transform_10(%arg0: i32, %arg1: i32) -> (i32, i32) {
    %c0_i32 = arith.constant 0 : i32
    %c0_i32_0 = arith.constant 0 : i32
    %c0_i32_1 = arith.constant 0 : i32
    return %c0_i32, %c0_i32_0 : i32, i32
  }
  func.func @transform_11(%arg0: i32, %arg1: i32) -> (i32, i32) {
    %c0_i32 = arith.constant 0 : i32
    %c0_i32_0 = arith.constant 0 : i32
    %c0_i32_1 = arith.constant 0 : i32
    return %c0_i32, %c0_i32_0 : i32, i32
  }
  func.func @transform_12(%arg0: i32, %arg1: i32) -> (i32, i32) {
    %c0_i32 = arith.constant 0 : i32
    %c0_i32_0 = arith.constant 0 : i32
    %c0_i32_1 = arith.constant 0 : i32
    return %c0_i32, %c0_i32_0 : i32, i32
  }
  func.func @transform_13(%arg0: i32, %arg1: i32) -> (i32, i32, i32) {
    %c0_i32 = arith.constant 0 : i32
    %c0_i32_0 = arith.constant 0 : i32
    return %arg0, %arg1, %c0_i32 : i32, i32, i32
  }
}

</mosaic_0001>

<llo_original>
// kernel: tpu_custom_call.1
$region0: #{tpu_custom_call.1}
  #allocation0 [shape = 'u32[]', space=smem, size = 0x4, offset = 0x4, fixed_abs, tag = 'smem constant byte address 0x4 - core index']
  #allocation1 [shape = 'u32[144,128]{1,0:T(1,128)}', space=vmem, size = 0x12000, scoped, tag = 'internal scratch']
  #allocation2 [shape = 'bf16[4,8,8]{2,1,0:T(8,128)(2,1)}', space=vmem, size = 0x2000, scoped, tag = 'scratch operand']
  #allocation3 [shape = 'bf16[4,8,8]{2,1,0:T(8,128)(2,1)}', space=vmem, size = 0x2000, scoped, tag = 'scratch operand']
  %s0 = inlined_call_operand.hbm [shape: f32[2,8,32], index: 0, kind: input, shape index: {}]
  %s1 = inlined_call_operand.hbm [shape: bf16[2,8,32], index: 1, kind: input, shape index: {}]
  %s2 = inlined_call_operand.hbm [shape: bf16[2,8,32], index: 2, kind: input, shape index: {}]
  %s3 = inlined_call_operand.hbm [shape: bf16[32,32], index: 3, kind: input, shape index: {}]
  %s4 = inlined_call_operand.vmem [shape: f32[1,32], index: 4, kind: input, shape index: {}]
  %s5 = inlined_call_operand.vmem [shape: bf16[32,32], index: 5, kind: input, shape index: {}]
  %s6 = inlined_call_operand.vmem [shape: f32[1,32], index: 6, kind: input, shape index: {}]
  %s7 = inlined_call_operand.hbm [shape: bf16[32,32], index: 7, kind: input, shape index: {}]
  %s8 = inlined_call_operand.hbm [shape: f32[1,32], index: 8, kind: input, shape index: {}]
  %s9 = inlined_call_operand.vmem [shape: bf16[32,32], index: 9, kind: input, shape index: {}]
  %s10 = inlined_call_operand.vmem [shape: f32[1,32], index: 10, kind: input, shape index: {}]
  %s11 = inlined_call_operand.vmem [shape: f32[1,32], index: 11, kind: input, shape index: {}]
  %s12 = inlined_call_operand.vmem [shape: f32[1,32], index: 12, kind: input, shape index: {}]
  %s13 = inlined_call_operand.hbm [shape: f32[2,8,32], index: 13, kind: output, shape index: {}]
  %s14 = sld [smem:[#allocation0]]
  $region113: #{tpu_custom_call.1} parent=0
    _
  %s16 = ssub.s32 1, %s14
  %s17 = scalar_select 0, %s16, %s14
  $region1: #{tpu_custom_call.1} parent=0
    #allocation4 [shape = 'u8[8192]{0}', space=vmem, size = 0x2000, scoped, tag = 'input window, operand 0']
    #allocation5 [shape = 's32[2]{0}', space=sflag, size = 0x8, scoped, tag = 'scoped memory for tpu_custom_call.1']
    #allocation6 [shape = 's32[2]{0}', space=sflag, size = 0x8, scoped, tag = 'scoped memory for tpu_custom_call.1']
    #allocation7 [shape = 'u8[4096]{0}', space=vmem, size = 0x1000, scoped, tag = 'input window, operand 1']
    #allocation8 [shape = 's32[2]{0}', space=sflag, size = 0x8, scoped, tag = 'scoped memory for tpu_custom_call.1']
    #allocation9 [shape = 'u8[4096]{0}', space=vmem, size = 0x1000, scoped, tag = 'input window, operand 2']
    #allocation10 [shape = 'u8[8192]{0}', space=vmem, size = 0x2000, scoped, tag = 'input window, operand 3, single buffered']
    #allocation11 [shape = 's32[1]{0}', space=sflag, size = 0x4, scoped, tag = 'scoped memory for tpu_custom_call.1']
    #allocation12 [shape = 'u8[8192]{0}', space=vmem, size = 0x2000, scoped, tag = 'input window, operand 7, single buffered']
    #allocation13 [shape = 'u8[512]{0}', space=vmem, size = 0x400, scoped, tag = 'input window, operand 8, single buffered']
    #allocation14 [shape = 's32[1]{0}', space=sflag, size = 0x4, scoped, tag = 'scoped memory for tpu_custom_call.1']
    #allocation15 [shape = 'u8[8192]{0}', space=vmem, size = 0x2000, scoped, tag = 'output window, operand 0']
    %18 = vsyncpa [#allocation5], 0
    %s19 = scalar_lea.sflag [#allocation5], 1
    %20 = vsyncpa %s19, 0
    %21 = vsyncpa [#allocation8], 0
    %s22 = scalar_lea.sflag [#allocation8], 1
    %23 = vsyncpa %s22, 0
    %24 = vsyncpa [#allocation11], 0
    %25 = vsyncpa [#allocation14], 0
    %26 = vsyncpa [#allocation6], 0
    %s27 = scalar_lea.sflag [#allocation6], 1
    %28 = vsyncpa %s27, 0
    loop: start=0, step=1, limit=4
    $region2: #{tpu_custom_call.1} parent=1 // loop_pre_header
      _
    $region3: #{tpu_custom_call.1} parent=1 // loop_header
      %s30 = sphi 0, %s34
      %p31 = scmp.ge.s32.totalorder %s30, 4
      %s37 = sphi 0, %s49
      %s38 = sphi 0, %s45
      %s39 = sphi 0, %s37
      %s40 = sphi 0, %s38
      %s41 = sphi 0, %s39
      %s42 = sphi 0, %s40
      %s54 = sphi 0, %s56
      %s57 = sphi 0, %s54
      %s58 = sphi 0, %s57
      %s74 = sphi 0, %s58
      %s80 = sphi 0, %s82
      %s83 = sphi 0, %s80
      %s84 = sphi 0, %s83
      %s100 = sphi 0, %s84
      %s106 = sphi 0, %s108
      %s109 = sphi 0, %s106
      %s110 = sphi 0, %s109
      %s126 = sphi 0, %s110
      %s130 = sphi 0, %s130
      %s132 = sphi 0, %s130
      %s133 = sphi 0, %s132
      %s147 = sphi 0, %s133
      %s151 = sphi 0, %s151
      %s153 = sphi 0, %s151
      %s154 = sphi 0, %s153
      %s168 = sphi 0, %s154
      %s172 = sphi 0, %s172
      %s174 = sphi 0, %s172
      %s175 = sphi 0, %s174
      %s189 = sphi 0, %s175
      %s193 = sphi 0, %s193
      %s195 = sphi 0, %s193
      %s196 = sphi 0, %s195
      %s210 = sphi 0, %s196
      %s214 = sphi 0, %s214
      %s216 = sphi 0, %s214
      %s217 = sphi 0, %s216
      %s231 = sphi 0, %s217
      %s235 = sphi 0, %s235
      %s237 = sphi 0, %s235
      %s238 = sphi 0, %s237
      %s252 = sphi 0, %s238
      %s256 = sphi 0, %s256
      %s258 = sphi 0, %s256
      %s259 = sphi 0, %s258
      %s273 = sphi 0, %s259
      %s277 = sphi 0, %s277
      %s279 = sphi 0, %s277
      %s280 = sphi 0, %s279
      %s294 = sphi 0, %s280
      %s298 = sphi 0, %s298
      %s300 = sphi 0, %s298
      %s301 = sphi 0, %s300
      %s315 = sphi 0, %s301
      %s319 = sphi 0, %s319
      %s321 = sphi 0, %s319
      %s322 = sphi 0, %s321
      %s336 = sphi 0, %s322
      %s344 = sphi 0, %s346
      %s347 = sphi 0, %s344
      %s348 = sphi 0, %s347
      %s364 = sphi 0, %s348
    $region4: #{tpu_custom_call.1} parent=1 // loop_header_branch
      %33 = sbr.rel (%p31) target = $region8
    $region5: #{tpu_custom_call.1} parent=1 // loop_body
      %s35 = ssub.s32 %s30, 1
      %s36 = ssub.s32 %s30, 2
      %s43 = sadd.s32 1, %s38
      %p44 = scmp.ge.s32.totalorder %s43, 1
      %s45 = scalar_select %p44, 0, %s43
      %s46 = sadd.s32 1, %s37
      %s47 = scalar_select %p44, %s46, %s37
      %p48 = scmp.ge.s32.totalorder %s47, 2
      %s49 = scalar_select %p48, 0, %s47
      %s50 = ssub.s32 %s37, %s49
      %s51 = ssub.s32 %s38, %s45
      %s52 = sor.u32 %s50, %s51
      %p53 = scmp.eq.s32.totalorder %s52, 0
      %s55 = sadd.s32 %s54, 1
      %s56 = scalar_select %p53, %s54, %s55
      %p59 = pneg %p53
      %p60 = scmp.eq.s32.totalorder %s30, 1
      %p61 = por %p59, %p60
      %p62 = scmp.ne.s32.totalorder %s54, %s57
      %p63 = scmp.eq.s32.totalorder %s30, 0
      %p64 = por %p62, %p63
      %p65 = scmp.ne.s32.totalorder %s54, %s57
      %p66 = scmp.eq.s32.totalorder %s35, 1
      %p67 = por %p65, %p66
      %p68 = scmp.ne.s32.totalorder %s57, %s58
      %p69 = scmp.eq.s32.totalorder %s35, 0
      %p70 = por %p68, %p69
      %p71 = scmp.ne.s32.totalorder %s57, %s58
      %p72 = scmp.eq.s32.totalorder %s36, 1
      %p73 = por %p71, %p72
      %p75 = scmp.ne.s32.totalorder %s58, %s74
      %p76 = scmp.eq.s32.totalorder %s36, 0
      %p77 = por %p75, %p76
      %s78 = ssub.s32 %s37, %s49
      %p79 = scmp.eq.s32.totalorder %s78, 0
      %s81 = sadd.s32 %s80, 1
      %s82 = scalar_select %p79, %s80, %s81
      %p85 = pneg %p79
      %p86 = scmp.eq.s32.totalorder %s30, 1
      %p87 = por %p85, %p86
      %p88 = scmp.ne.s32.totalorder %s80, %s83
      %p89 = scmp.eq.s32.totalorder %s30, 0
      %p90 = por %p88, %p89
      %p91 = scmp.ne.s32.totalorder %s80, %s83
      %p92 = scmp.eq.s32.totalorder %s35, 1
      %p93 = por %p91, %p92
      %p94 = scmp.ne.s32.totalorder %s83, %s84
      %p95 = scmp.eq.s32.totalorder %s35, 0
      %p96 = por %p94, %p95
      %p97 = scmp.ne.s32.totalorder %s83, %s84
      %p98 = scmp.eq.s32.totalorder %s36, 1
      %p99 = por %p97, %p98
      %p101 = scmp.ne.s32.totalorder %s84, %s100
      %p102 = scmp.eq.s32.totalorder %s36, 0
      %p103 = por %p101, %p102
      %s104 = ssub.s32 %s37, %s49
      %p105 = scmp.eq.s32.totalorder %s104, 0
      %s107 = sadd.s32 %s106, 1
      %s108 = scalar_select %p105, %s106, %s107
      %p111 = pneg %p105
      %p112 = scmp.eq.s32.totalorder %s30, 1
      %p113 = por %p111, %p112
      %p114 = scmp.ne.s32.totalorder %s106, %s109
      %p115 = scmp.eq.s32.totalorder %s30, 0
      %p116 = por %p114, %p115
      %p117 = scmp.ne.s32.totalorder %s106, %s109
      %p118 = scmp.eq.s32.totalorder %s35, 1
      %p119 = por %p117, %p118
      %p120 = scmp.ne.s32.totalorder %s109, %s110
      %p121 = scmp.eq.s32.totalorder %s35, 0
      %p122 = por %p120, %p121
      %p123 = scmp.ne.s32.totalorder %s109, %s110
      %p124 = scmp.eq.s32.totalorder %s36, 1
      %p125 = por %p123, %p124
      %p127 = scmp.ne.s32.totalorder %s110, %s126
      %p128 = scmp.eq.s32.totalorder %s36, 0
      %p129 = por %p127, %p128
      %s131 = sadd.s32 %s130, 1
      %p134 = scmp.eq.s32.totalorder %s30, 1
      %p135 = scmp.ne.s32.totalorder %s130, %s132
      %p136 = scmp.eq.s32.totalorder %s30, 0
      %p137 = por %p135, %p136
      %p138 = scmp.ne.s32.totalorder %s130, %s132
      %p139 = scmp.eq.s32.totalorder %s35, 1
      %p140 = por %p138, %p139
      %p141 = scmp.ne.s32.totalorder %s132, %s133
      %p142 = scmp.eq.s32.totalorder %s35, 0
      %p143 = por %p141, %p142
      %p144 = scmp.ne.s32.totalorder %s132, %s133
      %p145 = scmp.eq.s32.totalorder %s36, 1
      %p146 = por %p144, %p145
      %p148 = scmp.ne.s32.totalorder %s133, %s147
      %p149 = scmp.eq.s32.totalorder %s36, 0
      %p150 = por %p148, %p149
      %s152 = sadd.s32 %s151, 1
      %p155 = scmp.eq.s32.totalorder %s30, 1
      %p156 = scmp.ne.s32.totalorder %s151, %s153
      %p157 = scmp.eq.s32.totalorder %s30, 0
      %p158 = por %p156, %p157
      %p159 = scmp.ne.s32.totalorder %s151, %s153
      %p160 = scmp.eq.s32.totalorder %s35, 1
      %p161 = por %p159, %p160
      %p162 = scmp.ne.s32.totalorder %s153, %s154
      %p163 = scmp.eq.s32.totalorder %s35, 0
      %p164 = por %p162, %p163
      %p165 = scmp.ne.s32.totalorder %s153, %s154
      %p166 = scmp.eq.s32.totalorder %s36, 1
      %p167 = por %p165, %p166
      %p169 = scmp.ne.s32.totalorder %s154, %s168
      %p170 = scmp.eq.s32.totalorder %s36, 0
      %p171 = por %p169, %p170
      %s173 = sadd.s32 %s172, 1
      %p176 = scmp.eq.s32.totalorder %s30, 1
      %p177 = scmp.ne.s32.totalorder %s172, %s174
      %p178 = scmp.eq.s32.totalorder %s30, 0
      %p179 = por %p177, %p178
      %p180 = scmp.ne.s32.totalorder %s172, %s174
      %p181 = scmp.eq.s32.totalorder %s35, 1
      %p182 = por %p180, %p181
      %p183 = scmp.ne.s32.totalorder %s174, %s175
      %p184 = scmp.eq.s32.totalorder %s35, 0
      %p185 = por %p183, %p184
      %p186 = scmp.ne.s32.totalorder %s174, %s175
      %p187 = scmp.eq.s32.totalorder %s36, 1
      %p188 = por %p186, %p187
      %p190 = scmp.ne.s32.totalorder %s175, %s189
      %p191 = scmp.eq.s32.totalorder %s36, 0
      %p192 = por %p190, %p191
      %s194 = sadd.s32 %s193, 1
      %p197 = scmp.eq.s32.totalorder %s30, 1
      %p198 = scmp.ne.s32.totalorder %s193, %s195
      %p199 = scmp.eq.s32.totalorder %s30, 0
      %p200 = por %p198, %p199
      %p201 = scmp.ne.s32.totalorder %s193, %s195
      %p202 = scmp.eq.s32.totalorder %s35, 1
      %p203 = por %p201, %p202
      %p204 = scmp.ne.s32.totalorder %s195, %s196
      %p205 = scmp.eq.s32.totalorder %s35, 0
      %p206 = por %p204, %p205
      %p207 = scmp.ne.s32.totalorder %s195, %s196
      %p208 = scmp.eq.s32.totalorder %s36, 1
      %p209 = por %p207, %p208
      %p211 = scmp.ne.s32.totalorder %s196, %s210
      %p212 = scmp.eq.s32.totalorder %s36, 0
      %p213 = por %p211, %p212
      %s215 = sadd.s32 %s214, 1
      %p218 = scmp.eq.s32.totalorder %s30, 1
      %p219 = scmp.ne.s32.totalorder %s214, %s216
      %p220 = scmp.eq.s32.totalorder %s30, 0
      %p221 = por %p219, %p220
      %p222 = scmp.ne.s32.totalorder %s214, %s216
      %p223 = scmp.eq.s32.totalorder %s35, 1
      %p224 = por %p222, %p223
      %p225 = scmp.ne.s32.totalorder %s216, %s217
      %p226 = scmp.eq.s32.totalorder %s35, 0
      %p227 = por %p225, %p226
      %p228 = scmp.ne.s32.totalorder %s216, %s217
      %p229 = scmp.eq.s32.totalorder %s36, 1
      %p230 = por %p228, %p229
      %p232 = scmp.ne.s32.totalorder %s217, %s231
      %p233 = scmp.eq.s32.totalorder %s36, 0
      %p234 = por %p232, %p233
      %s236 = sadd.s32 %s235, 1
      %p239 = scmp.eq.s32.totalorder %s30, 1
      %p240 = scmp.ne.s32.totalorder %s235, %s237
      %p241 = scmp.eq.s32.totalorder %s30, 0
      %p242 = por %p240, %p241
      %p243 = scmp.ne.s32.totalorder %s235, %s237
      %p244 = scmp.eq.s32.totalorder %s35, 1
      %p245 = por %p243, %p244
      %p246 = scmp.ne.s32.totalorder %s237, %s238
      %p247 = scmp.eq.s32.totalorder %s35, 0
      %p248 = por %p246, %p247
      %p249 = scmp.ne.s32.totalorder %s237, %s238
      %p250 = scmp.eq.s32.totalorder %s36, 1
      %p251 = por %p249, %p250
      %p253 = scmp.ne.s32.totalorder %s238, %s252
      %p254 = scmp.eq.s32.totalorder %s36, 0
      %p255 = por %p253, %p254
      %s257 = sadd.s32 %s256, 1
      %p260 = scmp.eq.s32.totalorder %s30, 1
      %p261 = scmp.ne.s32.totalorder %s256, %s258
      %p262 = scmp.eq.s32.totalorder %s30, 0
      %p263 = por %p261, %p262
      %p264 = scmp.ne.s32.totalorder %s256, %s258
      %p265 = scmp.eq.s32.totalorder %s35, 1
      %p266 = por %p264, %p265
      %p267 = scmp.ne.s32.totalorder %s258, %s259
      %p268 = scmp.eq.s32.totalorder %s35, 0
      %p269 = por %p267, %p268
      %p270 = scmp.ne.s32.totalorder %s258, %s259
      %p271 = scmp.eq.s32.totalorder %s36, 1
      %p272 = por %p270, %p271
      %p274 = scmp.ne.s32.totalorder %s259, %s273
      %p275 = scmp.eq.s32.totalorder %s36, 0
      %p276 = por %p274, %p275
      %s278 = sadd.s32 %s277, 1
      %p281 = scmp.eq.s32.totalorder %s30, 1
      %p282 = scmp.ne.s32.totalorder %s277, %s279
      %p283 = scmp.eq.s32.totalorder %s30, 0
      %p284 = por %p282, %p283
      %p285 = scmp.ne.s32.totalorder %s277, %s279
      %p286 = scmp.eq.s32.totalorder %s35, 1
      %p287 = por %p285, %p286
      %p288 = scmp.ne.s32.totalorder %s279, %s280
      %p289 = scmp.eq.s32.totalorder %s35, 0
      %p290 = por %p288, %p289
      %p291 = scmp.ne.s32.totalorder %s279, %s280
      %p292 = scmp.eq.s32.totalorder %s36, 1
      %p293 = por %p291, %p292
      %p295 = scmp.ne.s32.totalorder %s280, %s294
      %p296 = scmp.eq.s32.totalorder %s36, 0
      %p297 = por %p295, %p296
      %s299 = sadd.s32 %s298, 1
      %p302 = scmp.eq.s32.totalorder %s30, 1
      %p303 = scmp.ne.s32.totalorder %s298, %s300
      %p304 = scmp.eq.s32.totalorder %s30, 0
      %p305 = por %p303, %p304
      %p306 = scmp.ne.s32.totalorder %s298, %s300
      %p307 = scmp.eq.s32.totalorder %s35, 1
      %p308 = por %p306, %p307
      %p309 = scmp.ne.s32.totalorder %s300, %s301
      %p310 = scmp.eq.s32.totalorder %s35, 0
      %p311 = por %p309, %p310
      %p312 = scmp.ne.s32.totalorder %s300, %s301
      %p313 = scmp.eq.s32.totalorder %s36, 1
      %p314 = por %p312, %p313
      %p316 = scmp.ne.s32.totalorder %s301, %s315
      %p317 = scmp.eq.s32.totalorder %s36, 0
      %p318 = por %p316, %p317
      %s320 = sadd.s32 %s319, 1
      %p323 = scmp.eq.s32.totalorder %s30, 1
      %p324 = scmp.ne.s32.totalorder %s319, %s321
      %p325 = scmp.eq.s32.totalorder %s30, 0
      %p326 = por %p324, %p325
      %p327 = scmp.ne.s32.totalorder %s319, %s321
      %p328 = scmp.eq.s32.totalorder %s35, 1
      %p329 = por %p327, %p328
      %p330 = scmp.ne.s32.totalorder %s321, %s322
      %p331 = scmp.eq.s32.totalorder %s35, 0
      %p332 = por %p330, %p331
      %p333 = scmp.ne.s32.totalorder %s321, %s322
      %p334 = scmp.eq.s32.totalorder %s36, 1
      %p335 = por %p333, %p334
      %p337 = scmp.ne.s32.totalorder %s322, %s336
      %p338 = scmp.eq.s32.totalorder %s36, 0
      %p339 = por %p337, %p338
      %s340 = ssub.s32 %s37, %s49
      %s341 = ssub.s32 %s38, %s45
      %s342 = sor.u32 %s340, %s341
      %p343 = scmp.eq.s32.totalorder %s342, 0
      %s345 = sadd.s32 %s344, 1
      %s346 = scalar_select %p343, %s344, %s345
      %p349 = pneg %p343
      %p350 = scmp.eq.s32.totalorder %s30, 1
      %p351 = por %p349, %p350
      %p352 = scmp.ne.s32.totalorder %s344, %s347
      %p353 = scmp.eq.s32.totalorder %s30, 0
      %p354 = por %p352, %p353
      %p355 = scmp.ne.s32.totalorder %s344, %s347
      %p356 = scmp.eq.s32.totalorder %s35, 1
      %p357 = por %p355, %p356
      %p358 = scmp.ne.s32.totalorder %s347, %s348
      %p359 = scmp.eq.s32.totalorder %s35, 0
      %p360 = por %p358, %p359
      %p361 = scmp.ne.s32.totalorder %s347, %s348
      %p362 = scmp.eq.s32.totalorder %s36, 1
      %p363 = por %p361, %p362
      %p365 = scmp.ne.s32.totalorder %s348, %s364
      %p366 = scmp.eq.s32.totalorder %s36, 0
      %p367 = por %p365, %p366
      %p368 = scmp.le.s32.totalorder 1, %s30
      %p369 = scmp.lt.s32.totalorder %s30, 3
      %p370 = pnand %p368, %p369
      %p371 = pneg %p370
      // Predicated region
      $region9: #{tpu_custom_call.1} parent=5 // pred_check
        _
      $region10: #{tpu_custom_call.1} parent=5 // pred_check_branch
        %373 = sbr.rel (%p370) target = $region12
      $region11: #{tpu_custom_call.1} parent=5 // pred_region
        %s374 = ssub.s32 %s30, 1
        // Predicated region
        $region13: #{tpu_custom_call.1} parent=11 // pred_check
          %p375 = pneg %p143
        $region14: #{tpu_custom_call.1} parent=11 // pred_check_branch
          %377 = sbr.rel (%p375) target = $region16
        $region15: #{tpu_custom_call.1} parent=11 // pred_region
          %s379 = ssub.s32 256, 256
          %380 = vsyncadd [#allocation11], %s379
          %s381 = sshll.u32 [#allocation10], 4
          %s382 = int_to_ptr.vmem [resolvable:$true] %s381
          %387 = dma.hbm_to_vmem [thread:$0]  %s3, 256, %s382, [#allocation11], 64, 64, 4
        $region16: #{tpu_custom_call.1} parent=11 // pred_fallthru
          _
        // Predicated region
        $region17: #{tpu_custom_call.1} parent=11 // pred_check
          %p388 = pneg %p164
        $region18: #{tpu_custom_call.1} parent=11 // pred_check_branch
          %390 = sbr.rel (%p388) target = $region20
        $region19: #{tpu_custom_call.1} parent=11 // pred_region
          _
        $region20: #{tpu_custom_call.1} parent=11 // pred_fallthru
          _
        // Predicated region
        $region21: #{tpu_custom_call.1} parent=11 // pred_check
          %p391 = pneg %p185
        $region22: #{tpu_custom_call.1} parent=11 // pred_check_branch
          %393 = sbr.rel (%p391) target = $region24
        $region23: #{tpu_custom_call.1} parent=11 // pred_region
          _
        $region24: #{tpu_custom_call.1} parent=11 // pred_fallthru
          _
        // Predicated region
        $region25: #{tpu_custom_call.1} parent=11 // pred_check
          %p394 = pneg %p206
        $region26: #{tpu_custom_call.1} parent=11 // pred_check_branch
          %396 = sbr.rel (%p394) target = $region28
        $region27: #{tpu_custom_call.1} parent=11 // pred_region
          _
        $region28: #{tpu_custom_call.1} parent=11 // pred_fallthru
          _
        // Predicated region
        $region29: #{tpu_custom_call.1} parent=11 // pred_check
          %p397 = pneg %p227
        $region30: #{tpu_custom_call.1} parent=11 // pred_check_branch
          %399 = sbr.rel (%p397) target = $region32
        $region31: #{tpu_custom_call.1} parent=11 // pred_region
          %s401 = ssub.s32 256, 256
          %402 = vsyncadd [#allocation11], %s401
          %s403 = sshll.u32 [#allocation12], 4
          %s404 = int_to_ptr.vmem [resolvable:$true] %s403
          %409 = dma.hbm_to_vmem [thread:$0]  %s7, 256, %s404, [#allocation11], 64, 64, 4
        $region32: #{tpu_custom_call.1} parent=11 // pred_fallthru
          _
        // Predicated region
        $region33: #{tpu_custom_call.1} parent=11 // pred_check
          %p410 = pneg %p248
        $region34: #{tpu_custom_call.1} parent=11 // pred_check_branch
          %412 = sbr.rel (%p410) target = $region36
        $region35: #{tpu_custom_call.1} parent=11 // pred_region
          %s414 = ssub.s32 16, 16
          %415 = vsyncadd [#allocation14], %s414
          %s417 = sshll.u32 [#allocation13], 4
          %s418 = int_to_ptr.vmem [resolvable:$true] %s417
          %420 = dma.hbm_to_vmem [thread:$0]  %s8, 16, %s418, [#allocation14]
        $region36: #{tpu_custom_call.1} parent=11 // pred_fallthru
          _
        // Predicated region
        $region37: #{tpu_custom_call.1} parent=11 // pred_check
          %p421 = pneg %p269
        $region38: #{tpu_custom_call.1} parent=11 // pred_check_branch
          %423 = sbr.rel (%p421) target = $region40
        $region39: #{tpu_custom_call.1} parent=11 // pred_region
          _
        $region40: #{tpu_custom_call.1} parent=11 // pred_fallthru
          _
        // Predicated region
        $region41: #{tpu_custom_call.1} parent=11 // pred_check
          %p424 = pneg %p290
        $region42: #{tpu_custom_call.1} parent=11 // pred_check_branch
          %426 = sbr.rel (%p424) target = $region44
        $region43: #{tpu_custom_call.1} parent=11 // pred_region
          _
        $region44: #{tpu_custom_call.1} parent=11 // pred_fallthru
          _
        // Predicated region
        $region45: #{tpu_custom_call.1} parent=11 // pred_check
          %p427 = pneg %p311
        $region46: #{tpu_custom_call.1} parent=11 // pred_check_branch
          %429 = sbr.rel (%p427) target = $region48
        $region47: #{tpu_custom_call.1} parent=11 // pred_region
          _
        $region48: #{tpu_custom_call.1} parent=11 // pred_fallthru
          _
        // Predicated region
        $region49: #{tpu_custom_call.1} parent=11 // pred_check
          %p430 = pneg %p332
        $region50: #{tpu_custom_call.1} parent=11 // pred_check_branch
          %432 = sbr.rel (%p430) target = $region52
        $region51: #{tpu_custom_call.1} parent=11 // pred_region
          _
        $region52: #{tpu_custom_call.1} parent=11 // pred_fallthru
          _
      $region12: #{tpu_custom_call.1} parent=5 // pred_fallthru
        _
      %p433 = scmp.lt.s32.totalorder %s30, 2
      // Predicated region
      $region53: #{tpu_custom_call.1} parent=5 // pred_check
        %p434 = pneg %p433
      $region54: #{tpu_custom_call.1} parent=5 // pred_check_branch
        %436 = sbr.rel (%p434) target = $region56
      $region55: #{tpu_custom_call.1} parent=5 // pred_region
        // Predicated region
        $region57: #{tpu_custom_call.1} parent=55 // pred_check
          %p437 = pneg %p64
        $region58: #{tpu_custom_call.1} parent=55 // pred_check_branch
          %439 = sbr.rel (%p437) target = $region60
        $region59: #{tpu_custom_call.1} parent=55 // pred_region
          %s440 = sand.u32 %s54, 1
          %s441 = scalar_lea.sflag [#allocation5], %s440
          %s442 = sand.u32 %s54, 1
          %s443 = smul.addr %s442, 8
          %s444 = scalar_lea.vmem [#allocation4], %s443
          %s446 = ssub.s32 128, 128
          %447 = vsyncadd %s441, %s446
          %s448 = sadd.s32 %s38, %s37
          %s449 = smul.addr %s448, 128
          %s450 = scalar_lea.hbm %s0, %s449
          %s452 = sshll.u32 %s444, 4
          %s453 = int_to_ptr.vmem [resolvable:$true] %s452
          %455 = dma.hbm_to_vmem [thread:$0]  %s450, 128, %s453, %s441
        $region60: #{tpu_custom_call.1} parent=55 // pred_fallthru
          _
        // Predicated region
        $region61: #{tpu_custom_call.1} parent=55 // pred_check
          %p456 = pneg %p90
        $region62: #{tpu_custom_call.1} parent=55 // pred_check_branch
          %458 = sbr.rel (%p456) target = $region64
        $region63: #{tpu_custom_call.1} parent=55 // pred_region
          %s459 = sand.u32 %s30, 1
          %s460 = scalar_lea.sflag [#allocation8], %s459
          %s461 = sand.u32 %s80, 1
          %s462 = smul.addr %s461, 4
          %s463 = scalar_lea.vmem [#allocation7], %s462
          %s465 = ssub.s32 64, 64
          %466 = vsyncadd %s460, %s465
          %s467 = smul.addr %s37, 64
          %s468 = scalar_lea.hbm %s1, %s467
          %s470 = sshll.u32 %s463, 4
          %s471 = int_to_ptr.vmem [resolvable:$true] %s470
          %473 = dma.hbm_to_vmem [thread:$0]  %s468, 64, %s471, %s460
        $region64: #{tpu_custom_call.1} parent=55 // pred_fallthru
          _
        // Predicated region
        $region65: #{tpu_custom_call.1} parent=55 // pred_check
          %p474 = pneg %p116
        $region66: #{tpu_custom_call.1} parent=55 // pred_check_branch
          %476 = sbr.rel (%p474) target = $region68
        $region67: #{tpu_custom_call.1} parent=55 // pred_region
          %s477 = sand.u32 %s30, 1
          %s478 = scalar_lea.sflag [#allocation8], %s477
          %s479 = sand.u32 %s106, 1
          %s480 = smul.addr %s479, 4
          %s481 = scalar_lea.vmem [#allocation9], %s480
          %s483 = ssub.s32 64, 64
          %484 = vsyncadd %s478, %s483
          %s485 = smul.addr %s37, 64
          %s486 = scalar_lea.hbm %s2, %s485
          %s488 = sshll.u32 %s481, 4
          %s489 = int_to_ptr.vmem [resolvable:$true] %s488
          %491 = dma.hbm_to_vmem [thread:$0]  %s486, 64, %s489, %s478
        $region68: #{tpu_custom_call.1} parent=55 // pred_fallthru
          _
      $region56: #{tpu_custom_call.1} parent=5 // pred_fallthru
        _
      %p492 = scmp.le.s32.totalorder 1, %s30
      %p493 = scmp.lt.s32.totalorder %s30, 3
      %p494 = pnand %p492, %p493
      %p495 = pneg %p494
      // Predicated region
      $region69: #{tpu_custom_call.1} parent=5 // pred_check
        _
      $region70: #{tpu_custom_call.1} parent=5 // pred_check_branch
        %497 = sbr.rel (%p494) target = $region72
      $region71: #{tpu_custom_call.1} parent=5 // pred_region
        %s498 = ssub.s32 %s30, 1
        %s499 = sand.u32 %s57, 1
        %s500 = scalar_lea.sflag [#allocation5], %s499
        %s501 = sand.u32 %s57, 1
        %s502 = smul.addr %s501, 8
        %s503 = scalar_lea.vmem [#allocation4], %s502
        // Predicated region
        $region73: #{tpu_custom_call.1} parent=71 // pred_check
          %p504 = pneg %p70
        $region74: #{tpu_custom_call.1} parent=71 // pred_check_branch
          %506 = sbr.rel (%p504) target = $region76
        $region75: #{tpu_custom_call.1} parent=71 // pred_region
          %507 = dma.done %s500, 128
        $region76: #{tpu_custom_call.1} parent=71 // pred_fallthru
          _
        %s508 = sand.u32 %s35, 1
        %s509 = scalar_lea.sflag [#allocation8], %s508
        %s510 = sand.u32 %s83, 1
        %s511 = smul.addr %s510, 4
        %s512 = scalar_lea.vmem [#allocation7], %s511
        // Predicated region
        $region77: #{tpu_custom_call.1} parent=71 // pred_check
          %p513 = pneg %p96
        $region78: #{tpu_custom_call.1} parent=71 // pred_check_branch
          %515 = sbr.rel (%p513) target = $region80
        $region79: #{tpu_custom_call.1} parent=71 // pred_region
          %516 = dma.done %s509, 64
        $region80: #{tpu_custom_call.1} parent=71 // pred_fallthru
          _
        %s517 = sand.u32 %s35, 1
        %s518 = scalar_lea.sflag [#allocation8], %s517
        %s519 = sand.u32 %s109, 1
        %s520 = smul.addr %s519, 4
        %s521 = scalar_lea.vmem [#allocation9], %s520
        // Predicated region
        $region81: #{tpu_custom_call.1} parent=71 // pred_check
          %p522 = pneg %p122
        $region82: #{tpu_custom_call.1} parent=71 // pred_check_branch
          %524 = sbr.rel (%p522) target = $region84
        $region83: #{tpu_custom_call.1} parent=71 // pred_region
          %525 = dma.done %s518, 64
        $region84: #{tpu_custom_call.1} parent=71 // pred_fallthru
          _
        // Predicated region
        $region85: #{tpu_custom_call.1} parent=71 // pred_check
          %p526 = pneg %p143
        $region86: #{tpu_custom_call.1} parent=71 // pred_check_branch
          %528 = sbr.rel (%p526) target = $region88
        $region87: #{tpu_custom_call.1} parent=71 // pred_region
          %529 = dma.done [#allocation11], 256
        $region88: #{tpu_custom_call.1} parent=71 // pred_fallthru
          _
        // Predicated region
        $region89: #{tpu_custom_call.1} parent=71 // pred_check
          %p530 = pneg %p227
        $region90: #{tpu_custom_call.1} parent=71 // pred_check_branch
          %532 = sbr.rel (%p530) target = $region92
        $region91: #{tpu_custom_call.1} parent=71 // pred_region
          %533 = dma.done [#allocation11], 256
        $region92: #{tpu_custom_call.1} parent=71 // pred_fallthru
          _
        // Predicated region
        $region93: #{tpu_custom_call.1} parent=71 // pred_check
          %p534 = pneg %p248
        $region94: #{tpu_custom_call.1} parent=71 // pred_check_branch
          %536 = sbr.rel (%p534) target = $region96
        $region95: #{tpu_custom_call.1} parent=71 // pred_region
          %537 = dma.done [#allocation14], 16
        $region96: #{tpu_custom_call.1} parent=71 // pred_fallthru
          _
        %s538 = sand.u32 %s57, 1
        %s539 = scalar_lea.sflag [#allocation5], %s538
        %s540 = sand.u32 %s57, 1
        %s541 = smul.addr %s540, 8
        %s542 = scalar_lea.vmem [#allocation4], %s541
        %p543 = pneg %p70
        %p544 = pneg %p67
        %s545 = sand.u32 %s35, 1
        %s546 = scalar_lea.sflag [#allocation8], %s545
        %s547 = sand.u32 %s83, 1
        %s548 = smul.addr %s547, 4
        %s549 = scalar_lea.vmem [#allocation7], %s548
        %p550 = pneg %p96
        %p551 = pneg %p93
        %s552 = sand.u32 %s35, 1
        %s553 = scalar_lea.sflag [#allocation8], %s552
        %s554 = sand.u32 %s109, 1
        %s555 = smul.addr %s554, 4
        %s556 = scalar_lea.vmem [#allocation9], %s555
        %p557 = pneg %p122
        %p558 = pneg %p119
        %p559 = pneg %p143
        %p560 = pneg %p140
        %p561 = pneg %p164
        %p562 = pneg %p161
        %p563 = pneg %p185
        %p564 = pneg %p182
        %p565 = pneg %p206
        %p566 = pneg %p203
        %p567 = pneg %p227
        %p568 = pneg %p224
        %p569 = pneg %p248
        %p570 = pneg %p245
        %p571 = pneg %p269
        %p572 = pneg %p266
        %p573 = pneg %p290
        %p574 = pneg %p287
        %p575 = pneg %p311
        %p576 = pneg %p308
        %p577 = pneg %p332
        %p578 = pneg %p329
        %p579 = pneg %p360
        %p580 = pneg %p357
        %s581 = sand.u32 %s347, 1
        %s582 = scalar_lea.sflag [#allocation6], %s581
        %s583 = sand.u32 %s347, 1
        %s584 = smul.addr %s583, 8
        %s585 = scalar_lea.vmem [#allocation15], %s584
        %p587 = scmp.eq.s32.totalorder %s40, 0
        // Predicated region
        $region97: #{tpu_custom_call.1} parent=71 // pred_check
          %p588 = pneg %p587
        $region98: #{tpu_custom_call.1} parent=71 // pred_check_branch
          %590 = sbr.rel (%p588) target = $region100
        $region99: #{tpu_custom_call.1} parent=71 // pred_region
          %v591 = vld [vmem:[%s512] sm:$0xf]
          %v592 = vld [vmem:[%s521] sm:$0xf]
          %v593 = vld [vmem:[%s5] sm:$0xf]
          %v594 = vld [vmem:[%s5 + $0x4] sm:$0xf]
          %v595 = vld [vmem:[%s5 + $0x8] sm:$0xf]
          %v596 = vld [vmem:[%s5 + $0xc] sm:$0xf]
          %v597 = vld [vmem:[%s6] sm:$0x1]
          %v599 = vlaneseq
          %v600 = vshrl.u32 %v599, 7
          %v601 = vsub.s32 0, %v600
          %v602 = vrot.slane %v597, %v601
          %v608 = vunpack.c.l.b16 %v593
          %v609 = vunpack.c.l.b16 %v594
          %v610 = vunpack.c.l.b16 %v595
          %v611 = vunpack.c.l.b16 %v596
          %v612 = vpack.c.b16 %v609, %v608
          %v613 = vpack.c.b16 %v611, %v610
          %vm616 = vcmask 261120
          %v618 = vsel %vm616, %v591, 0
          %620 = vmatprep.subr.bf16.mxu0 0
          %621 = vmatpush1.bf16.msra.mxu0 %v612
          %622 = vmatprep.subr.bf16.mxu0 0
          %623 = vmatpush1.bf16.msra.mxu0 %v613
          %624 = vmatprep.subr.bf16.mxu0 0
          %625 = vmatpush1.bf16.msra.mxu0 0
          %626 = vmatprep.subr.bf16.mxu0 0
          %627 = vmatpush1.bf16.msra.mxu0 0
          %628 = vmatprep.subr.bf16.mxu0 0
          %629 = vmatpush1.bf16.msra.mxu0 0
          %630 = vmatprep.subr.bf16.mxu0 0
          %631 = vmatpush1.bf16.msra.mxu0 0
          %632 = vmatprep.subr.bf16.mxu0 0
          %633 = vmatpush1.bf16.msra.mxu0 0
          %634 = vmatprep.subr.bf16.mxu0 0
          %635 = vmatpush1.bf16.msra.mxu0 0
          %636 = vmatprep.subr.bf16.mxu0 0
          %637 = vmatpush1.bf16.msra.mxu0 0
          %638 = vmatprep.subr.bf16.mxu0 0
          %639 = vmatpush1.bf16.msra.mxu0 0
          %640 = vmatprep.subr.bf16.mxu0 0
          %641 = vmatpush1.bf16.msra.mxu0 0
          %642 = vmatprep.subr.bf16.mxu0 0
          %643 = vmatpush1.bf16.msra.mxu0 0
          %644 = vmatprep.subr.bf16.mxu0 0
          %645 = vmatpush1.bf16.msra.mxu0 0
          %646 = vmatprep.subr.bf16.mxu0 0
          %647 = vmatpush1.bf16.msra.mxu0 0
          %648 = vmatprep.subr.bf16.mxu0 0
          %649 = vmatpush1.bf16.msra.mxu0 0
          %650 = vmatprep.subr.bf16.mxu0 0
          %651 = vmatpush1.bf16.msra.mxu0 0
          %652 = vmatprep.mubr.bf16.mxu0 0
          %653 = vmatmul.mubr.bf16.gmra.mrb[0].mxu0 %v618
          %v654 = vpop.f32.mrb[0].mxu0
          %v655 = vadd.f32 %v602, %v654
          %v656 = vpop.f32.mrb[0].mxu0
          %v657 = vpop.f32.mrb[0].mxu0
          %v658 = vpop.f32.mrb[0].mxu0
          %659 = vdwg.mxu0
          %v660 = vld [vmem:[#allocation12] sm:$0xf]
          %v661 = vld [vmem:[#allocation12 + $0x4] sm:$0xf]
          %v662 = vld [vmem:[#allocation12 + $0x8] sm:$0xf]
          %v663 = vld [vmem:[#allocation12 + $0xc] sm:$0xf]
          %v664 = vld [vmem:[#allocation13] sm:$0x1]
          %v666 = vlaneseq
          %v667 = vshrl.u32 %v666, 7
          %v668 = vsub.s32 0, %v667
          %v669 = vrot.slane %v664, %v668
          %v675 = vunpack.c.l.b16 %v660
          %v676 = vunpack.c.l.b16 %v661
          %v677 = vunpack.c.l.b16 %v662
          %v678 = vunpack.c.l.b16 %v663
          %v679 = vpack.c.b16 %v676, %v675
          %v680 = vpack.c.b16 %v678, %v677
          %v684 = vsel %vm616, %v592, 0
          %686 = vmatprep.subr.bf16.mxu0 0
          %687 = vmatpush1.bf16.msra.mxu0 %v679
          %688 = vmatprep.subr.bf16.mxu0 0
          %689 = vmatpush1.bf16.msra.mxu0 %v680
          %690 = vmatprep.subr.bf16.mxu0 0
          %691 = vmatpush1.bf16.msra.mxu0 0
          %692 = vmatprep.subr.bf16.mxu0 0
          %693 = vmatpush1.bf16.msra.mxu0 0
          %694 = vmatprep.subr.bf16.mxu0 0
          %695 = vmatpush1.bf16.msra.mxu0 0
          %696 = vmatprep.subr.bf16.mxu0 0
          %697 = vmatpush1.bf16.msra.mxu0 0
          %698 = vmatprep.subr.bf16.mxu0 0
          %699 = vmatpush1.bf16.msra.mxu0 0
          %700 = vmatprep.subr.bf16.mxu0 0
          %701 = vmatpush1.bf16.msra.mxu0 0
          %702 = vmatprep.subr.bf16.mxu0 0
          %703 = vmatpush1.bf16.msra.mxu0 0
          %704 = vmatprep.subr.bf16.mxu0 0
          %705 = vmatpush1.bf16.msra.mxu0 0
          %706 = vmatprep.subr.bf16.mxu0 0
          %707 = vmatpush1.bf16.msra.mxu0 0
          %708 = vmatprep.subr.bf16.mxu0 0
          %709 = vmatpush1.bf16.msra.mxu0 0
          %710 = vmatprep.subr.bf16.mxu0 0
          %711 = vmatpush1.bf16.msra.mxu0 0
          %712 = vmatprep.subr.bf16.mxu0 0
          %713 = vmatpush1.bf16.msra.mxu0 0
          %714 = vmatprep.subr.bf16.mxu0 0
          %715 = vmatpush1.bf16.msra.mxu0 0
          %716 = vmatprep.subr.bf16.mxu0 0
          %717 = vmatpush1.bf16.msra.mxu0 0
          %718 = vmatprep.mubr.bf16.mxu0 0
          %719 = vmatmul.mubr.bf16.gmra.mrb[0].mxu0 %v684
          %v720 = vpop.f32.mrb[0].mxu0
          %v721 = vadd.f32 %v669, %v720
          %v722 = vpop.f32.mrb[0].mxu0
          %v723 = vpop.f32.mrb[0].mxu0
          %v724 = vpop.f32.mrb[0].mxu0
          %725 = vdwg.mxu0
          %v726 = vpack.c.bf16 %v655, %v655
          %vm727 = vcmask 60416
          %728 = vst.msk [vmem:[#allocation2] sm:$0xf] %vm727, %v726
          %v729 = vpack.c.bf16 %v721, %v721
          %730 = vst.msk [vmem:[#allocation3] sm:$0xf] %vm727, %v729
          %v732 = vunpack.c.l.b16 %v726
          %v733 = vpack.c.b16 %v732, %v732
          %734 = vrot.lane.b32.xlu0 %v733, 120
          %v735 = vpop.permute.xlu0 %734
          %s737 = scalar_lea.vmem [#allocation2], 4
          %738 = vst.msk [vmem:[%s737] sm:$0xf] %vm727, %v735
          %v740 = vunpack.c.l.b16 %v729
          %v741 = vpack.c.b16 %v740, %v740
          %742 = vrot.lane.b32.xlu0 %v741, 120
          %v743 = vpop.permute.xlu0 %742
          %s745 = scalar_lea.vmem [#allocation3], 4
          %746 = vst.msk [vmem:[%s745] sm:$0xf] %vm727, %v743
          %747 = vrot.lane.b32.xlu0 %v733, 112
          %v748 = vpop.permute.xlu0 %747
          %s750 = scalar_lea.vmem [#allocation2], 8
          %751 = vst.msk [vmem:[%s750] sm:$0xf] %vm727, %v748
          %752 = vrot.lane.b32.xlu0 %v741, 112
          %v753 = vpop.permute.xlu0 %752
          %s755 = scalar_lea.vmem [#allocation3], 8
          %756 = vst.msk [vmem:[%s755] sm:$0xf] %vm727, %v753
          %757 = vrot.lane.b32.xlu0 %v733, 104
          %v758 = vpop.permute.xlu0 %757
          %s760 = scalar_lea.vmem [#allocation2], 12
          %761 = vst.msk [vmem:[%s760] sm:$0xf] %vm727, %v758
          %762 = vrot.lane.b32.xlu0 %v741, 104
          %v763 = vpop.permute.xlu0 %762
          %s765 = scalar_lea.vmem [#allocation3], 12
          %766 = vst.msk [vmem:[%s765] sm:$0xf] %vm727, %v763
        $region100: #{tpu_custom_call.1} parent=71 // pred_fallthru
          _
        %v767 = vld [vmem:[%s503] sm:$0xff]
        %v768 = vpack.c.bf16 %v767, %v767
        %v769 = vld [vmem:[#allocation10] sm:$0xf]
        %v770 = vld [vmem:[#allocation10 + $0x4] sm:$0xf]
        %v771 = vld [vmem:[#allocation10 + $0x8] sm:$0xf]
        %v772 = vld [vmem:[#allocation10 + $0xc] sm:$0xf]
        %v773 = vld [vmem:[%s4] sm:$0x1]
        %v775 = vlaneseq
        %v776 = vshrl.u32 %v775, 7
        %v777 = vsub.s32 0, %v776
        %v778 = vrot.slane %v773, %v777
        %v784 = vunpack.c.l.b16 %v769
        %v785 = vunpack.c.l.b16 %v770
        %v786 = vunpack.c.l.b16 %v771
        %v787 = vunpack.c.l.b16 %v772
        %v788 = vpack.c.b16 %v785, %v784
        %v789 = vpack.c.b16 %v787, %v786
        %vm792 = vcmask 261120
        %v794 = vsel %vm792, %v768, 0
        %796 = vmatprep.subr.bf16.mxu0 0
        %797 = vmatpush1.bf16.msra.mxu0 %v788
        %798 = vmatprep.subr.bf16.mxu0 0
        %799 = vmatpush1.bf16.msra.mxu0 %v789
        %800 = vmatprep.subr.bf16.mxu0 0
        %801 = vmatpush1.bf16.msra.mxu0 0
        %802 = vmatprep.subr.bf16.mxu0 0
        %803 = vmatpush1.bf16.msra.mxu0 0
        %804 = vmatprep.subr.bf16.mxu0 0
        %805 = vmatpush1.bf16.msra.mxu0 0
        %806 = vmatprep.subr.bf16.mxu0 0
        %807 = vmatpush1.bf16.msra.mxu0 0
        %808 = vmatprep.subr.bf16.mxu0 0
        %809 = vmatpush1.bf16.msra.mxu0 0
        %810 = vmatprep.subr.bf16.mxu0 0
        %811 = vmatpush1.bf16.msra.mxu0 0
        %812 = vmatprep.subr.bf16.mxu0 0
        %813 = vmatpush1.bf16.msra.mxu0 0
        %814 = vmatprep.subr.bf16.mxu0 0
        %815 = vmatpush1.bf16.msra.mxu0 0
        %816 = vmatprep.subr.bf16.mxu0 0
        %817 = vmatpush1.bf16.msra.mxu0 0
        %818 = vmatprep.subr.bf16.mxu0 0
        %819 = vmatpush1.bf16.msra.mxu0 0
        %820 = vmatprep.subr.bf16.mxu0 0
        %821 = vmatpush1.bf16.msra.mxu0 0
        %822 = vmatprep.subr.bf16.mxu0 0
        %823 = vmatpush1.bf16.msra.mxu0 0
        %824 = vmatprep.subr.bf16.mxu0 0
        %825 = vmatpush1.bf16.msra.mxu0 0
        %826 = vmatprep.subr.bf16.mxu0 0
        %827 = vmatpush1.bf16.msra.mxu0 0
        %828 = vmatprep.mubr.bf16.mxu0 0
        %829 = vmatmul.mubr.bf16.gmra.mrb[0].mxu0 %v794
        %v830 = vpop.f32.mrb[0].mxu0
        %v831 = vadd.f32 %v778, %v830
        %v832 = vpop.f32.mrb[0].mxu0
        %v833 = vpop.f32.mrb[0].mxu0
        %v834 = vpop.f32.mrb[0].mxu0
        %835 = vdwg.mxu0
        %v836 = vpack.c.bf16 %v831, %v831
        %838 = vrot.lane.b32.xlu0 %v836, 120
        %v839 = vpop.permute.xlu0 %838
        %840 = vrot.lane.b32.xlu0 %v836, 112
        %v841 = vpop.permute.xlu0 %840
        %842 = vrot.lane.b32.xlu0 %v836, 104
        %v843 = vpop.permute.xlu0 %842
        %v844 = vld [vmem:[#allocation2] sm:$0xf]
        %v845 = vld [vmem:[#allocation2 + $0x4] sm:$0xf]
        %v846 = vld [vmem:[#allocation2 + $0x8] sm:$0xf]
        %v847 = vld [vmem:[#allocation2 + $0xc] sm:$0xf]
        %v848 = vld [vmem:[#allocation3] sm:$0xf]
        %v849 = vld [vmem:[#allocation3 + $0x4] sm:$0xf]
        %v850 = vld [vmem:[#allocation3 + $0x8] sm:$0xf]
        %v851 = vld [vmem:[#allocation3 + $0xc] sm:$0xf]
        %vm852 = vcmask 64512
        %v854 = vsel %vm852, %v836, 0
        %v857 = vsel %vm852, %v844, 0
        %859 = vmatprep.subr.bf16.mxu0 0
        %860 = vmatpush1.bf16.xpose.msra.mxu0 %v857
        %861 = vmatprep.subr.bf16.mxu0 0
        %862 = vmatpush1.bf16.xpose.msra.mxu0 0
        %863 = vmatprep.subr.bf16.mxu0 0
        %864 = vmatpush1.bf16.xpose.msra.mxu0 0
        %865 = vmatprep.subr.bf16.mxu0 0
        %866 = vmatpush1.bf16.xpose.msra.mxu0 0
        %867 = vmatprep.subr.bf16.mxu0 0
        %868 = vmatpush1.bf16.xpose.msra.mxu0 0
        %869 = vmatprep.subr.bf16.mxu0 0
        %870 = vmatpush1.bf16.xpose.msra.mxu0 0
        %871 = vmatprep.subr.bf16.mxu0 0
        %872 = vmatpush1.bf16.xpose.msra.mxu0 0
        %873 = vmatprep.subr.bf16.mxu0 0
        %874 = vmatpush1.bf16.xpose.msra.mxu0 0
        %875 = vmatprep.subr.bf16.mxu0 0
        %876 = vmatpush1.bf16.xpose.msra.mxu0 0
        %877 = vmatprep.subr.bf16.mxu0 0
        %878 = vmatpush1.bf16.xpose.msra.mxu0 0
        %879 = vmatprep.subr.bf16.mxu0 0
        %880 = vmatpush1.bf16.xpose.msra.mxu0 0
        %881 = vmatprep.subr.bf16.mxu0 0
        %882 = vmatpush1.bf16.xpose.msra.mxu0 0
        %883 = vmatprep.subr.bf16.mxu0 0
        %884 = vmatpush1.bf16.xpose.msra.mxu0 0
        %885 = vmatprep.subr.bf16.mxu0 0
        %886 = vmatpush1.bf16.xpose.msra.mxu0 0
        %887 = vmatprep.subr.bf16.mxu0 0
        %888 = vmatpush1.bf16.xpose.msra.mxu0 0
        %889 = vmatprep.subr.bf16.mxu0 0
        %890 = vmatpush1.bf16.xpose.msra.mxu0 0
        %891 = vmatprep.mubr.bf16.mxu0 0
        %892 = vmatmul.mubr.bf16.gmra.mrb[0].mxu0 %v854
        %v893 = vpop.f32.mrb[0].mxu0
        %v894 = vadd.f32 0.0, %v893
        %v895 = vpop.f32.mrb[0].mxu0
        %v896 = vpop.f32.mrb[0].mxu0
        %v897 = vpop.f32.mrb[0].mxu0
        %898 = vdwg.mxu0
        %v900 = vsel %vm852, %v839, 0
        %v903 = vsel %vm852, %v845, 0
        %905 = vmatprep.subr.bf16.mxu0 0
        %906 = vmatpush1.bf16.xpose.msra.mxu0 %v903
        %907 = vmatprep.subr.bf16.mxu0 0
        %908 = vmatpush1.bf16.xpose.msra.mxu0 0
        %909 = vmatprep.subr.bf16.mxu0 0
        %910 = vmatpush1.bf16.xpose.msra.mxu0 0
        %911 = vmatprep.subr.bf16.mxu0 0
        %912 = vmatpush1.bf16.xpose.msra.mxu0 0
        %913 = vmatprep.subr.bf16.mxu0 0
        %914 = vmatpush1.bf16.xpose.msra.mxu0 0
        %915 = vmatprep.subr.bf16.mxu0 0
        %916 = vmatpush1.bf16.xpose.msra.mxu0 0
        %917 = vmatprep.subr.bf16.mxu0 0
        %918 = vmatpush1.bf16.xpose.msra.mxu0 0
        %919 = vmatprep.subr.bf16.mxu0 0
        %920 = vmatpush1.bf16.xpose.msra.mxu0 0
        %921 = vmatprep.subr.bf16.mxu0 0
        %922 = vmatpush1.bf16.xpose.msra.mxu0 0
        %923 = vmatprep.subr.bf16.mxu0 0
        %924 = vmatpush1.bf16.xpose.msra.mxu0 0
        %925 = vmatprep.subr.bf16.mxu0 0
        %926 = vmatpush1.bf16.xpose.msra.mxu0 0
        %927 = vmatprep.subr.bf16.mxu0 0
        %928 = vmatpush1.bf16.xpose.msra.mxu0 0
        %929 = vmatprep.subr.bf16.mxu0 0
        %930 = vmatpush1.bf16.xpose.msra.mxu0 0
        %931 = vmatprep.subr.bf16.mxu0 0
        %932 = vmatpush1.bf16.xpose.msra.mxu0 0
        %933 = vmatprep.subr.bf16.mxu0 0
        %934 = vmatpush1.bf16.xpose.msra.mxu0 0
        %935 = vmatprep.subr.bf16.mxu0 0
        %936 = vmatpush1.bf16.xpose.msra.mxu0 0
        %937 = vmatprep.mubr.bf16.mxu0 0
        %938 = vmatmul.mubr.bf16.gmra.mrb[0].mxu0 %v900
        %v939 = vpop.f32.mrb[0].mxu0
        %v940 = vadd.f32 0.0, %v939
        %v941 = vpop.f32.mrb[0].mxu0
        %v942 = vpop.f32.mrb[0].mxu0
        %v943 = vpop.f32.mrb[0].mxu0
        %944 = vdwg.mxu0
        %v946 = vsel %vm852, %v841, 0
        %v949 = vsel %vm852, %v846, 0
        %951 = vmatprep.subr.bf16.mxu0 0
        %952 = vmatpush1.bf16.xpose.msra.mxu0 %v949
        %953 = vmatprep.subr.bf16.mxu0 0
        %954 = vmatpush1.bf16.xpose.msra.mxu0 0
        %955 = vmatprep.subr.bf16.mxu0 0
        %956 = vmatpush1.bf16.xpose.msra.mxu0 0
        %957 = vmatprep.subr.bf16.mxu0 0
        %958 = vmatpush1.bf16.xpose.msra.mxu0 0
        %959 = vmatprep.subr.bf16.mxu0 0
        %960 = vmatpush1.bf16.xpose.msra.mxu0 0
        %961 = vmatprep.subr.bf16.mxu0 0
        %962 = vmatpush1.bf16.xpose.msra.mxu0 0
        %963 = vmatprep.subr.bf16.mxu0 0
        %964 = vmatpush1.bf16.xpose.msra.mxu0 0
        %965 = vmatprep.subr.bf16.mxu0 0
        %966 = vmatpush1.bf16.xpose.msra.mxu0 0
        %967 = vmatprep.subr.bf16.mxu0 0
        %968 = vmatpush1.bf16.xpose.msra.mxu0 0
        %969 = vmatprep.subr.bf16.mxu0 0
        %970 = vmatpush1.bf16.xpose.msra.mxu0 0
        %971 = vmatprep.subr.bf16.mxu0 0
        %972 = vmatpush1.bf16.xpose.msra.mxu0 0
        %973 = vmatprep.subr.bf16.mxu0 0
        %974 = vmatpush1.bf16.xpose.msra.mxu0 0
        %975 = vmatprep.subr.bf16.mxu0 0
        %976 = vmatpush1.bf16.xpose.msra.mxu0 0
        %977 = vmatprep.subr.bf16.mxu0 0
        %978 = vmatpush1.bf16.xpose.msra.mxu0 0
        %979 = vmatprep.subr.bf16.mxu0 0
        %980 = vmatpush1.bf16.xpose.msra.mxu0 0
        %981 = vmatprep.subr.bf16.mxu0 0
        %982 = vmatpush1.bf16.xpose.msra.mxu0 0
        %983 = vmatprep.mubr.bf16.mxu0 0
        %984 = vmatmul.mubr.bf16.gmra.mrb[0].mxu0 %v946
        %v985 = vpop.f32.mrb[0].mxu0
        %v986 = vadd.f32 0.0, %v985
        %v987 = vpop.f32.mrb[0].mxu0
        %v988 = vpop.f32.mrb[0].mxu0
        %v989 = vpop.f32.mrb[0].mxu0
        %990 = vdwg.mxu0
        %v992 = vsel %vm852, %v843, 0
        %v995 = vsel %vm852, %v847, 0
        %997 = vmatprep.subr.bf16.mxu0 0
        %998 = vmatpush1.bf16.xpose.msra.mxu0 %v995
        %999 = vmatprep.subr.bf16.mxu0 0
        %1000 = vmatpush1.bf16.xpose.msra.mxu0 0
        %1001 = vmatprep.subr.bf16.mxu0 0
        %1002 = vmatpush1.bf16.xpose.msra.mxu0 0
        %1003 = vmatprep.subr.bf16.mxu0 0
        %1004 = vmatpush1.bf16.xpose.msra.mxu0 0
        %1005 = vmatprep.subr.bf16.mxu0 0
        %1006 = vmatpush1.bf16.xpose.msra.mxu0 0
        %1007 = vmatprep.subr.bf16.mxu0 0
        %1008 = vmatpush1.bf16.xpose.msra.mxu0 0
        %1009 = vmatprep.subr.bf16.mxu0 0
        %1010 = vmatpush1.bf16.xpose.msra.mxu0 0
        %1011 = vmatprep.subr.bf16.mxu0 0
        %1012 = vmatpush1.bf16.xpose.msra.mxu0 0
        %1013 = vmatprep.subr.bf16.mxu0 0
        %1014 = vmatpush1.bf16.xpose.msra.mxu0 0
        %1015 = vmatprep.subr.bf16.mxu0 0
        %1016 = vmatpush1.bf16.xpose.msra.mxu0 0
        %1017 = vmatprep.subr.bf16.mxu0 0
        %1018 = vmatpush1.bf16.xpose.msra.mxu0 0
        %1019 = vmatprep.subr.bf16.mxu0 0
        %1020 = vmatpush1.bf16.xpose.msra.mxu0 0
        %1021 = vmatprep.subr.bf16.mxu0 0
        %1022 = vmatpush1.bf16.xpose.msra.mxu0 0
        %1023 = vmatprep.subr.bf16.mxu0 0
        %1024 = vmatpush1.bf16.xpose.msra.mxu0 0
        %1025 = vmatprep.subr.bf16.mxu0 0
        %1026 = vmatpush1.bf16.xpose.msra.mxu0 0
        %1027 = vmatprep.subr.bf16.mxu0 0
        %1028 = vmatpush1.bf16.xpose.msra.mxu0 0
        %1029 = vmatprep.mubr.bf16.mxu0 0
        %1030 = vmatmul.mubr.bf16.gmra.mrb[0].mxu0 %v992
        %v1031 = vpop.f32.mrb[0].mxu0
        %v1032 = vadd.f32 0.0, %v1031
        %v1033 = vpop.f32.mrb[0].mxu0
        %v1034 = vpop.f32.mrb[0].mxu0
        %v1035 = vpop.f32.mrb[0].mxu0
        %1036 = vdwg.mxu0
        %v1037 = vsel %vm852, %v894, -inf
        %1038 = vmax.xlane.f32.xlu0 %v1037
        %v1039 = vpop.xlane.xlu0 %1038
        %v1040 = vsel %vm852, %v940, -inf
        %1041 = vmax.xlane.f32.xlu0 %v1040
        %v1042 = vpop.xlane.xlu0 %1041
        %v1043 = vsel %vm852, %v986, -inf
        %1044 = vmax.xlane.f32.xlu0 %v1043
        %v1045 = vpop.xlane.xlu0 %1044
        %v1046 = vsel %vm852, %v1032, -inf
        %1047 = vmax.xlane.f32.xlu0 %v1046
        %v1048 = vpop.xlane.xlu0 %1047
        %v1049 = vsub.f32 %v894, %v1039
        %v1050 = vsub.f32 %v940, %v1042
        %v1051 = vsub.f32 %v986, %v1045
        %v1052 = vsub.f32 %v1032, %v1048
        %v1053 = vmul.f32 %v1049, 1.442695
        %v1054 = vpow.pop %v1053
        %v1055 = vmul.f32 %v1050, 1.442695
        %v1056 = vpow.pop %v1055
        %v1057 = vmul.f32 %v1051, 1.442695
        %v1058 = vpow.pop %v1057
        %v1059 = vmul.f32 %v1052, 1.442695
        %v1060 = vpow.pop %v1059
        %v1061 = vsel %vm852, %v1054, 0.0
        %1062 = vadd.xlane.f32.xlu0 %v1061
        %v1063 = vpop.xlane.xlu0 %1062
        %v1064 = vsel %vm852, %v1056, 0.0
        %1065 = vadd.xlane.f32.xlu0 %v1064
        %v1066 = vpop.xlane.xlu0 %1065
        %v1067 = vsel %vm852, %v1058, 0.0
        %1068 = vadd.xlane.f32.xlu0 %v1067
        %v1069 = vpop.xlane.xlu0 %1068
        %v1070 = vsel %vm852, %v1060, 0.0
        %1071 = vadd.xlane.f32.xlu0 %v1070
        %v1072 = vpop.xlane.xlu0 %1071
        %v1073 = vpack.c.bf16 %v1054, %v1054
        %v1074 = vpack.c.bf16 %v1056, %v1056
        %v1075 = vpack.c.bf16 %v1058, %v1058
        %v1076 = vpack.c.bf16 %v1060, %v1060
        %v1078 = vsel %vm852, %v1073, 0
        %vm1080 = vcmask 1043456
        %v1082 = vsel %vm1080, %v848, 0
        %1084 = vmatprep.subr.bf16.mxu0 0
        %1085 = vmatpush1.bf16.msra.mxu0 %v1082
        %1086 = vmatprep.subr.bf16.mxu0 0
        %1087 = vmatpush1.bf16.msra.mxu0 0
        %1088 = vmatprep.subr.bf16.mxu0 0
        %1089 = vmatpush1.bf16.msra.mxu0 0
        %1090 = vmatprep.subr.bf16.mxu0 0
        %1091 = vmatpush1.bf16.msra.mxu0 0
        %1092 = vmatprep.subr.bf16.mxu0 0
        %1093 = vmatpush1.bf16.msra.mxu0 0
        %1094 = vmatprep.subr.bf16.mxu0 0
        %1095 = vmatpush1.bf16.msra.mxu0 0
        %1096 = vmatprep.subr.bf16.mxu0 0
        %1097 = vmatpush1.bf16.msra.mxu0 0
        %1098 = vmatprep.subr.bf16.mxu0 0
        %1099 = vmatpush1.bf16.msra.mxu0 0
        %1100 = vmatprep.subr.bf16.mxu0 0
        %1101 = vmatpush1.bf16.msra.mxu0 0
        %1102 = vmatprep.subr.bf16.mxu0 0
        %1103 = vmatpush1.bf16.msra.mxu0 0
        %1104 = vmatprep.subr.bf16.mxu0 0
        %1105 = vmatpush1.bf16.msra.mxu0 0
        %1106 = vmatprep.subr.bf16.mxu0 0
        %1107 = vmatpush1.bf16.msra.mxu0 0
        %1108 = vmatprep.subr.bf16.mxu0 0
        %1109 = vmatpush1.bf16.msra.mxu0 0
        %1110 = vmatprep.subr.bf16.mxu0 0
        %1111 = vmatpush1.bf16.msra.mxu0 0
        %1112 = vmatprep.subr.bf16.mxu0 0
        %1113 = vmatpush1.bf16.msra.mxu0 0
        %1114 = vmatprep.subr.bf16.mxu0 0
        %1115 = vmatpush1.bf16.msra.mxu0 0
        %1116 = vmatprep.mubr.bf16.mxu0 0
        %1117 = vmatmul.mubr.bf16.gmra.mrb[0].mxu0 %v1078
        %v1118 = vpop.f32.mrb[0].mxu0
        %v1119 = vadd.f32 0.0, %v1118
        %v1120 = vpop.f32.mrb[0].mxu0
        %v1121 = vpop.f32.mrb[0].mxu0
        %v1122 = vpop.f32.mrb[0].mxu0
        %1123 = vdwg.mxu0
        %v1125 = vsel %vm852, %v1074, 0
        %v1128 = vsel %vm1080, %v849, 0
        %1130 = vmatprep.subr.bf16.mxu0 0
        %1131 = vmatpush1.bf16.msra.mxu0 %v1128
        %1132 = vmatprep.subr.bf16.mxu0 0
        %1133 = vmatpush1.bf16.msra.mxu0 0
        %1134 = vmatprep.subr.bf16.mxu0 0
        %1135 = vmatpush1.bf16.msra.mxu0 0
        %1136 = vmatprep.subr.bf16.mxu0 0
        %1137 = vmatpush1.bf16.msra.mxu0 0
        %1138 = vmatprep.subr.bf16.mxu0 0
        %1139 = vmatpush1.bf16.msra.mxu0 0
        %1140 = vmatprep.subr.bf16.mxu0 0
        %1141 = vmatpush1.bf16.msra.mxu0 0
        %1142 = vmatprep.subr.bf16.mxu0 0
        %1143 = vmatpush1.bf16.msra.mxu0 0
        %1144 = vmatprep.subr.bf16.mxu0 0
        %1145 = vmatpush1.bf16.msra.mxu0 0
        %1146 = vmatprep.subr.bf16.mxu0 0
        %1147 = vmatpush1.bf16.msra.mxu0 0
        %1148 = vmatprep.subr.bf16.mxu0 0
        %1149 = vmatpush1.bf16.msra.mxu0 0
        %1150 = vmatprep.subr.bf16.mxu0 0
        %1151 = vmatpush1.bf16.msra.mxu0 0
        %1152 = vmatprep.subr.bf16.mxu0 0
        %1153 = vmatpush1.bf16.msra.mxu0 0
        %1154 = vmatprep.subr.bf16.mxu0 0
        %1155 = vmatpush1.bf16.msra.mxu0 0
        %1156 = vmatprep.subr.bf16.mxu0 0
        %1157 = vmatpush1.bf16.msra.mxu0 0
        %1158 = vmatprep.subr.bf16.mxu0 0
        %1159 = vmatpush1.bf16.msra.mxu0 0
        %1160 = vmatprep.subr.bf16.mxu0 0
        %1161 = vmatpush1.bf16.msra.mxu0 0
        %1162 = vmatprep.mubr.bf16.mxu0 0
        %1163 = vmatmul.mubr.bf16.gmra.mrb[0].mxu0 %v1125
        %v1164 = vpop.f32.mrb[0].mxu0
        %v1165 = vadd.f32 0.0, %v1164
        %v1166 = vpop.f32.mrb[0].mxu0
        %v1167 = vpop.f32.mrb[0].mxu0
        %v1168 = vpop.f32.mrb[0].mxu0
        %1169 = vdwg.mxu0
        %v1171 = vsel %vm852, %v1075, 0
        %v1174 = vsel %vm1080, %v850, 0
        %1176 = vmatprep.subr.bf16.mxu0 0
        %1177 = vmatpush1.bf16.msra.mxu0 %v1174
        %1178 = vmatprep.subr.bf16.mxu0 0
        %1179 = vmatpush1.bf16.msra.mxu0 0
        %1180 = vmatprep.subr.bf16.mxu0 0
        %1181 = vmatpush1.bf16.msra.mxu0 0
        %1182 = vmatprep.subr.bf16.mxu0 0
        %1183 = vmatpush1.bf16.msra.mxu0 0
        %1184 = vmatprep.subr.bf16.mxu0 0
        %1185 = vmatpush1.bf16.msra.mxu0 0
        %1186 = vmatprep.subr.bf16.mxu0 0
        %1187 = vmatpush1.bf16.msra.mxu0 0
        %1188 = vmatprep.subr.bf16.mxu0 0
        %1189 = vmatpush1.bf16.msra.mxu0 0
        %1190 = vmatprep.subr.bf16.mxu0 0
        %1191 = vmatpush1.bf16.msra.mxu0 0
        %1192 = vmatprep.subr.bf16.mxu0 0
        %1193 = vmatpush1.bf16.msra.mxu0 0
        %1194 = vmatprep.subr.bf16.mxu0 0
        %1195 = vmatpush1.bf16.msra.mxu0 0
        %1196 = vmatprep.subr.bf16.mxu0 0
        %1197 = vmatpush1.bf16.msra.mxu0 0
        %1198 = vmatprep.subr.bf16.mxu0 0
        %1199 = vmatpush1.bf16.msra.mxu0 0
        %1200 = vmatprep.subr.bf16.mxu0 0
        %1201 = vmatpush1.bf16.msra.mxu0 0
        %1202 = vmatprep.subr.bf16.mxu0 0
        %1203 = vmatpush1.bf16.msra.mxu0 0
        %1204 = vmatprep.subr.bf16.mxu0 0
        %1205 = vmatpush1.bf16.msra.mxu0 0
        %1206 = vmatprep.subr.bf16.mxu0 0
        %1207 = vmatpush1.bf16.msra.mxu0 0
        %1208 = vmatprep.mubr.bf16.mxu0 0
        %1209 = vmatmul.mubr.bf16.gmra.mrb[0].mxu0 %v1171
        %v1210 = vpop.f32.mrb[0].mxu0
        %v1211 = vadd.f32 0.0, %v1210
        %v1212 = vpop.f32.mrb[0].mxu0
        %v1213 = vpop.f32.mrb[0].mxu0
        %v1214 = vpop.f32.mrb[0].mxu0
        %1215 = vdwg.mxu0
        %v1217 = vsel %vm852, %v1076, 0
        %v1220 = vsel %vm1080, %v851, 0
        %1222 = vmatprep.subr.bf16.mxu0 0
        %1223 = vmatpush1.bf16.msra.mxu0 %v1220
        %1224 = vmatprep.subr.bf16.mxu0 0
        %1225 = vmatpush1.bf16.msra.mxu0 0
        %1226 = vmatprep.subr.bf16.mxu0 0
        %1227 = vmatpush1.bf16.msra.mxu0 0
        %1228 = vmatprep.subr.bf16.mxu0 0
        %1229 = vmatpush1.bf16.msra.mxu0 0
        %1230 = vmatprep.subr.bf16.mxu0 0
        %1231 = vmatpush1.bf16.msra.mxu0 0
        %1232 = vmatprep.subr.bf16.mxu0 0
        %1233 = vmatpush1.bf16.msra.mxu0 0
        %1234 = vmatprep.subr.bf16.mxu0 0
        %1235 = vmatpush1.bf16.msra.mxu0 0
        %1236 = vmatprep.subr.bf16.mxu0 0
        %1237 = vmatpush1.bf16.msra.mxu0 0
        %1238 = vmatprep.subr.bf16.mxu0 0
        %1239 = vmatpush1.bf16.msra.mxu0 0
        %1240 = vmatprep.subr.bf16.mxu0 0
        %1241 = vmatpush1.bf16.msra.mxu0 0
        %1242 = vmatprep.subr.bf16.mxu0 0
        %1243 = vmatpush1.bf16.msra.mxu0 0
        %1244 = vmatprep.subr.bf16.mxu0 0
        %1245 = vmatpush1.bf16.msra.mxu0 0
        %1246 = vmatprep.subr.bf16.mxu0 0
        %1247 = vmatpush1.bf16.msra.mxu0 0
        %1248 = vmatprep.subr.bf16.mxu0 0
        %1249 = vmatpush1.bf16.msra.mxu0 0
        %1250 = vmatprep.subr.bf16.mxu0 0
        %1251 = vmatpush1.bf16.msra.mxu0 0
        %1252 = vmatprep.subr.bf16.mxu0 0
        %1253 = vmatpush1.bf16.msra.mxu0 0
        %1254 = vmatprep.mubr.bf16.mxu0 0
        %1255 = vmatmul.mubr.bf16.gmra.mrb[0].mxu0 %v1217
        %v1256 = vpop.f32.mrb[0].mxu0
        %v1257 = vadd.f32 0.0, %v1256
        %v1258 = vpop.f32.mrb[0].mxu0
        %v1259 = vpop.f32.mrb[0].mxu0
        %v1260 = vpop.f32.mrb[0].mxu0
        %1261 = vdwg.mxu0
        %v1262 = vrcp.pop %v1063
        %v1263 = vrcp.pop %v1066
        %v1264 = vrcp.pop %v1069
        %v1265 = vrcp.pop %v1072
        %v1266 = vmul.f32 %v1119, %v1262
        %v1267 = vmul.f32 %v1165, %v1263
        %v1268 = vmul.f32 %v1211, %v1264
        %v1269 = vmul.f32 %v1257, %v1265
        %1271 = vrot.lane.b32.xlu0 %v1267, 8
        %v1272 = vpop.permute.xlu0 %1271
        %1275 = vrot.lane.b32.xlu0 %v1268, 16
        %v1276 = vpop.permute.xlu0 %1275
        %1279 = vrot.lane.b32.xlu0 %v1269, 24
        %v1280 = vpop.permute.xlu0 %1279
        %v1282 = vsel %vm852, %v1266, %v1272
        %vm1283 = vcmask 130048
        %v1284 = vsel %vm1283, %v1282, %v1276
        %vm1285 = vcmask 195584
        %v1286 = vsel %vm1285, %v1284, %v1280
        %v1287 = vpack.c.bf16 %v1286, %v1286
        %v1288 = vld [vmem:[%s9] sm:$0xf]
        %v1289 = vld [vmem:[%s9 + $0x4] sm:$0xf]
        %v1290 = vld [vmem:[%s9 + $0x8] sm:$0xf]
        %v1291 = vld [vmem:[%s9 + $0xc] sm:$0xf]
        %v1292 = vld [vmem:[%s10] sm:$0x1]
        %v1294 = vlaneseq
        %v1295 = vshrl.u32 %v1294, 7
        %v1296 = vsub.s32 0, %v1295
        %v1297 = vrot.slane %v1292, %v1296
        %v1303 = vunpack.c.l.b16 %v1288
        %v1304 = vunpack.c.l.b16 %v1289
        %v1305 = vunpack.c.l.b16 %v1290
        %v1306 = vunpack.c.l.b16 %v1291
        %v1307 = vpack.c.b16 %v1304, %v1303
        %v1308 = vpack.c.b16 %v1306, %v1305
        %v1312 = vsel %vm792, %v1287, 0
        %1314 = vmatprep.subr.bf16.mxu0 0
        %1315 = vmatpush1.bf16.msra.mxu0 %v1307
        %1316 = vmatprep.subr.bf16.mxu0 0
        %1317 = vmatpush1.bf16.msra.mxu0 %v1308
        %1318 = vmatprep.subr.bf16.mxu0 0
        %1319 = vmatpush1.bf16.msra.mxu0 0
        %1320 = vmatprep.subr.bf16.mxu0 0
        %1321 = vmatpush1.bf16.msra.mxu0 0
        %1322 = vmatprep.subr.bf16.mxu0 0
        %1323 = vmatpush1.bf16.msra.mxu0 0
        %1324 = vmatprep.subr.bf16.mxu0 0
        %1325 = vmatpush1.bf16.msra.mxu0 0
        %1326 = vmatprep.subr.bf16.mxu0 0
        %1327 = vmatpush1.bf16.msra.mxu0 0
        %1328 = vmatprep.subr.bf16.mxu0 0
        %1329 = vmatpush1.bf16.msra.mxu0 0
        %1330 = vmatprep.subr.bf16.mxu0 0
        %1331 = vmatpush1.bf16.msra.mxu0 0
        %1332 = vmatprep.subr.bf16.mxu0 0
        %1333 = vmatpush1.bf16.msra.mxu0 0
        %1334 = vmatprep.subr.bf16.mxu0 0
        %1335 = vmatpush1.bf16.msra.mxu0 0
        %1336 = vmatprep.subr.bf16.mxu0 0
        %1337 = vmatpush1.bf16.msra.mxu0 0
        %1338 = vmatprep.subr.bf16.mxu0 0
        %1339 = vmatpush1.bf16.msra.mxu0 0
        %1340 = vmatprep.subr.bf16.mxu0 0
        %1341 = vmatpush1.bf16.msra.mxu0 0
        %1342 = vmatprep.subr.bf16.mxu0 0
        %1343 = vmatpush1.bf16.msra.mxu0 0
        %1344 = vmatprep.subr.bf16.mxu0 0
        %1345 = vmatpush1.bf16.msra.mxu0 0
        %1346 = vmatprep.mubr.bf16.mxu0 0
        %1347 = vmatmul.mubr.bf16.gmra.mrb[0].mxu0 %v1312
        %v1348 = vpop.f32.mrb[0].mxu0
        %v1349 = vadd.f32 %v1297, %v1348
        %v1350 = vpop.f32.mrb[0].mxu0
        %v1351 = vpop.f32.mrb[0].mxu0
        %v1352 = vpop.f32.mrb[0].mxu0
        %1353 = vdwg.mxu0
        %v1354 = vadd.f32 %v1349, %v767
        %v1355 = vsel %vm792, %v1354, 0.0
        %1356 = vadd.xlane.f32.xlu0 %v1355
        %v1357 = vpop.xlane.xlu0 %1356
        %v1358 = vrcp.pop 32.0
        %v1359 = vmul.f32 %v1357, %v1358
        %v1360 = vsub.f32 %v1354, %v1359
        %v1361 = vmul.f32 %v1360, %v1360
        %v1362 = vsel %vm792, %v1361, 0.0
        %1363 = vadd.xlane.f32.xlu0 %v1362
        %v1364 = vpop.xlane.xlu0 %1363
        %v1365 = vmul.f32 %v1364, %v1358
        %v1366 = vadd.f32 %v1365, 1e-05
        %v1367 = vrsqrt.pop %v1366
        %v1368 = vmul.f32 %v1360, %v1367
        %v1369 = vld [vmem:[%s11] sm:$0x1]
        %v1371 = vlaneseq
        %v1372 = vshrl.u32 %v1371, 7
        %v1373 = vsub.s32 0, %v1372
        %v1374 = vrot.slane %v1369, %v1373
        %v1376 = vmul.f32 %v1368, %v1374
        %v1377 = vld [vmem:[%s12] sm:$0x1]
        %v1379 = vlaneseq
        %v1380 = vshrl.u32 %v1379, 7
        %v1381 = vsub.s32 0, %v1380
        %v1382 = vrot.slane %v1377, %v1381
        %v1384 = vadd.f32 %v1376, %v1382
        %1385 = vst.msk [vmem:[%s585] sm:$0xff] %vm792, %v1384
        %s1386 = sand.u32 %s347, 1
        %s1387 = scalar_lea.sflag [#allocation6], %s1386
        %s1388 = sand.u32 %s347, 1
        %s1389 = smul.addr %s1388, 8
        %s1390 = scalar_lea.vmem [#allocation15], %s1389
        // Predicated region
        $region101: #{tpu_custom_call.1} parent=71 // pred_check
          %p1391 = pneg %p357
        $region102: #{tpu_custom_call.1} parent=71 // pred_check_branch
          %1393 = sbr.rel (%p1391) target = $region104
        $region103: #{tpu_custom_call.1} parent=71 // pred_region
          %s1395 = ssub.s32 128, 128
          %1396 = vsyncadd %s1387, %s1395
          %s1397 = sadd.s32 %s40, %s39
          %s1398 = smul.addr %s1397, 128
          %s1399 = scalar_lea.hbm %s13, %s1398
          %s1401 = sshll.u32 %s1390, 4
          %s1402 = int_to_ptr.vmem [resolvable:$true] %s1401
          %1404 = dma.vmem_to_hbm [thread:$0]  %s1402, 128, %s1399, %s1387
        $region104: #{tpu_custom_call.1} parent=71 // pred_fallthru
          _
      $region72: #{tpu_custom_call.1} parent=5 // pred_fallthru
        _
      %p1405 = scmp.le.s32.totalorder 2, %s30
      // Predicated region
      $region105: #{tpu_custom_call.1} parent=5 // pred_check
        %p1406 = pneg %p1405
      $region106: #{tpu_custom_call.1} parent=5 // pred_check_branch
        %1408 = sbr.rel (%p1406) target = $region108
      $region107: #{tpu_custom_call.1} parent=5 // pred_region
        %s1409 = ssub.s32 %s30, 2
        // Predicated region
        $region109: #{tpu_custom_call.1} parent=107 // pred_check
          %p1410 = pneg %p363
        $region110: #{tpu_custom_call.1} parent=107 // pred_check_branch
          %1412 = sbr.rel (%p1410) target = $region112
        $region111: #{tpu_custom_call.1} parent=107 // pred_region
          %s1413 = sand.u32 %s348, 1
          %s1414 = scalar_lea.sflag [#allocation6], %s1413
          %s1415 = sand.u32 %s348, 1
          %s1416 = smul.addr %s1415, 8
          %s1417 = scalar_lea.vmem [#allocation15], %s1416
          %1418 = dma.done %s1414, 128
        $region112: #{tpu_custom_call.1} parent=107 // pred_fallthru
          _
      $region108: #{tpu_custom_call.1} parent=5 // pred_fallthru
        _
    $region6: #{tpu_custom_call.1} parent=1 // loop_footer
      %s34 = sadd.s32 1, %s30
    $region7: #{tpu_custom_call.1} parent=1 // loop_footer_branch
      %29 = sbr.rel target = $region3
    $region8: #{tpu_custom_call.1} parent=1 // loop_exit
      _
    %1419 = vsyncpa [#allocation5], 1
    %s1420 = scalar_lea.sflag [#allocation5], 1
    %1421 = vsyncpa %s1420, 1
    %1422 = vsyncpa [#allocation8], 1
    %s1423 = scalar_lea.sflag [#allocation8], 1
    %1424 = vsyncpa %s1423, 1
    %1425 = vsyncpa [#allocation11], 1
    %1426 = vsyncpa [#allocation14], 1
    %1427 = vsyncpa [#allocation6], 1
    %s1428 = scalar_lea.sflag [#allocation6], 1
    %1429 = vsyncpa %s1428, 1

</llo_original>
